<compile_context>
chip_gen: v7x
topology: tpu7x:2x2x1
jax: 0.10.0
libtpu: 0.0.40
codegen_flags: <defaults>
</compile_context>

<pallas_src>
import functools

import jax
import jax.numpy as jnp
from jax.experimental import pallas as pl
from jax.experimental.pallas import tpu as pltpu


def _round_up(a: int, b: int) -> int:
    return ((a + b - 1) // b) * b


def _mlp_kernel(x_ref, w1_ref, b1_ref, w2_ref, b2_ref, o_ref, acc_ref):
    # x_ref  : (tm, tk)       bf16  current batch-tile x K-tile of the input
    # w1_ref : (tk, H)        bf16  current K-slab of the first weight
    # b1_ref : (1, H)         f32   resident across the K loop
    # w2_ref : (H, Cp)        bf16  resident across the K loop (Cp = padded classes)
    # b2_ref : (1, Cp)        f32   resident across the K loop
    # o_ref  : (tm, Cp)       f32
    # acc_ref: (tm, H)        f32   VMEM scratch accumulator
    k = pl.program_id(1)

    @pl.when(k == 0)
    def _():
        acc_ref[...] = jnp.zeros_like(acc_ref)

    acc_ref[...] += jnp.dot(
        x_ref[...], w1_ref[...], preferred_element_type=jnp.float32
    )

    @pl.when(k == pl.num_programs(1) - 1)
    def _():
        h = jnp.maximum(acc_ref[...] + b1_ref[...], 0.0)          # bias + ReLU
        out = jnp.dot(h.astype(w2_ref.dtype), w2_ref[...],
                      preferred_element_type=jnp.float32)
        o_ref[...] = (out + b2_ref[...]).astype(o_ref.dtype)


def prepare_params(w1, b1, w2, b2, *, target_tk=4096):
    """One-time param prep: pad + cast weights (hoisted out of the forward).

    Returns ((w1_p, b1_p, w2_p, b2_p), meta) where meta holds the static
    tiling info the forward needs.
    """
    n_features, hidden = w1.shape
    n_classes = w2.shape[1]

    # K tile: multiple of 256 (bf16 packing), no larger than needed.
    tk = min(_round_up(n_features, 256), _round_up(target_tk, 256))
    F_pad = _round_up(n_features, tk)
    # Output classes -> 128 lanes so stores are unmasked / lane-dense.
    C_pad = _round_up(max(n_classes, 128), 128)

    w1_p = jnp.pad(w1.astype(jnp.float32),
                   ((0, F_pad - n_features), (0, 0))).astype(jnp.bfloat16)
    w2_p = jnp.pad(w2.astype(jnp.float32),
                   ((0, 0), (0, C_pad - n_classes))).astype(jnp.bfloat16)
    b1_p = b1.reshape(1, hidden).astype(jnp.float32)
    b2_p = jnp.pad(b2.reshape(1, n_classes).astype(jnp.float32),
                   ((0, 0), (0, C_pad - n_classes)))

    meta = dict(n_features=int(n_features), hidden=int(hidden),
                n_classes=int(n_classes), tk=int(tk),
                F_pad=int(F_pad), C_pad=int(C_pad))
    return (w1_p, b1_p, w2_p, b2_p), meta


@functools.partial(
    jax.jit,
    static_argnames=("n_features", "hidden", "n_classes", "tk", "F_pad", "C_pad"),
)
def simple_video_classifier_forward(x, w1_p, b1_p, w2_p, b2_p, *,
                                    n_features, hidden, n_classes,
                                    tk, F_pad, C_pad):
    """x: (B, T, H, W) float32; returns (B, n_classes) float32."""
    B = x.shape[0]

    # nn.Flatten: flatten everything but the batch dim (row-major), bf16 once.
    x_flat = x.reshape(B, n_features).astype(jnp.bfloat16)

    # Batch tile: multiple of 16 (bf16 sublane packing), up to 256 rows so the
    # w1 K-slabs are reused across many rows before being re-streamed.
    tm = min(256, _round_up(B, 16))
    B_pad = _round_up(B, tm)

    x_p = jnp.pad(x_flat, ((0, B_pad - B), (0, F_pad - n_features)))

    m_tiles = B_pad // tm
    k_tiles = F_pad // tk

    cost = pl.CostEstimate(
        flops=2 * B_pad * F_pad * hidden + 2 * B_pad * hidden * C_pad,
        transcendentals=0,
        bytes_accessed=(
            B_pad * F_pad * 2                 # x (bf16), read once
            + m_tiles * F_pad * hidden * 2    # w1 (bf16), re-streamed per M tile
            + hidden * C_pad * 2              # w2 (bf16)
            + (hidden + C_pad) * 4            # biases (f32)
            + B_pad * C_pad * 4               # output (f32)
        ),
    )

    out = pl.pallas_call(
        _mlp_kernel,
        out_shape=jax.ShapeDtypeStruct((B_pad, C_pad), jnp.float32),
        grid_spec=pltpu.PrefetchScalarGridSpec(
            num_scalar_prefetch=0,
            grid=(m_tiles, k_tiles),
            in_specs=[
                pl.BlockSpec((tm, tk), lambda i, k: (i, k)),         # x tile
                pl.BlockSpec((tk, hidden), lambda i, k: (k, 0)),     # w1 K-slab
                pl.BlockSpec((1, hidden), lambda i, k: (0, 0)),      # b1 (resident)
                pl.BlockSpec((hidden, C_pad), lambda i, k: (0, 0)),  # w2 (resident)
                pl.BlockSpec((1, C_pad), lambda i, k: (0, 0)),       # b2 (resident)
            ],
            out_specs=pl.BlockSpec((tm, C_pad), lambda i, k: (i, 0)),
            scratch_shapes=[pltpu.VMEM((tm, hidden), jnp.float32)],
        ),
        compiler_params=pltpu.CompilerParams(
            dimension_semantics=("parallel", "arbitrary"),
            vmem_limit_bytes=32 * 1024 * 1024,
        ),
        cost_estimate=cost,
    )(x_p, w1_p, b1_p, w2_p, b2_p)

    return out[:B, :n_classes]


def init_params(key, n_features, hidden, n_classes):
    """Deterministic synthetic parameters (nn.Linear math, stored as (in, out))."""
    k1, k2, k3, k4 = jax.random.split(key, 4)
    # Mimic PyTorch's U(-1/sqrt(fan_in), 1/sqrt(fan_in)) init scale.
    s1 = 1.0 / jnp.sqrt(n_features)
    s2 = 1.0 / jnp.sqrt(hidden)
    w1 = jax.random.uniform(k1, (n_features, hidden), jnp.float32, -s1, s1)
    b1 = jax.random.uniform(k2, (hidden,), jnp.float32, -s1, s1)
    w2 = jax.random.uniform(k3, (hidden, n_classes), jnp.float32, -s2, s2)
    b2 = jax.random.uniform(k4, (n_classes,), jnp.float32, -s2, s2)
    return w1, b1, w2, b2


if __name__ == "__main__":
    # Small shapes consistent with the module:
    # input_size = (16, 16), n_frames_per_clip = 8, n_classes = 2, batch = 2
    B, T, H, W = 2, 8, 16, 16
    n_classes = 2
    hidden = 256
    n_features = T * H * W  # prod(input_size) * n_frames_per_clip = 2048

    key = jax.random.PRNGKey(0)
    kx, kp = jax.random.split(key)
    x = jax.random.normal(kx, (B, T, H, W), dtype=jnp.float32)
    w1, b1, w2, b2 = init_params(kp, n_features, hidden, n_classes)

    # One-time weight prep (pad + bf16 cast) hoisted out of the forward.
    params, meta = prepare_params(w1, b1, w2, b2, target_tk=4096)

    out = simple_video_classifier_forward(x, *params, **meta)
    out = jax.block_until_ready(out)

    # Reference with the same bf16-input / f32-accumulate math (outside Pallas).
    xb = x.reshape(B, -1).astype(jnp.bfloat16)
    ref_h = jnp.maximum(
        jnp.dot(xb, w1.astype(jnp.bfloat16),
                preferred_element_type=jnp.float32) + b1, 0.0)
    ref = jnp.dot(ref_h.astype(jnp.bfloat16), w2.astype(jnp.bfloat16),
                  preferred_element_type=jnp.float32) + b2

    assert out.shape == (B, n_classes)
    assert jnp.allclose(out, ref, atol=1e-2, rtol=1e-2)

    print("KERNEL_OK")
</pallas_src>

<mosaic_0001>
module attributes {stable_mosaic.version = 11 : i64} {
  func.func @_mlp_kernel(%arg0: i32, %arg1: i32, %arg2: memref<16x2048xbf16, #tpu.memory_space<vmem>>, %arg3: memref<2048x256xbf16, #tpu.memory_space<vmem>>, %arg4: memref<1x256xf32, #tpu.memory_space<vmem>>, %arg5: memref<256x128xbf16, #tpu.memory_space<vmem>>, %arg6: memref<1x128xf32, #tpu.memory_space<vmem>>, %arg7: memref<16x128xf32, #tpu.memory_space<vmem>>, %arg8: memref<16x256xf32, #tpu.memory_space<vmem>>) attributes {dimension_semantics = [#tpu.dimension_semantics<parallel>, #tpu.dimension_semantics<arbitrary>], iteration_bounds = array<i64: 1, 1>, scalar_prefetch = 0 : i64, scratch_operands = 1 : i64, tpu.core_type = #tpu.core_type<tc>, window_params = [{transform_indices = @transform_0, window_bounds = array<i64: 16, 2048>}, {transform_indices = @transform_1, window_bounds = array<i64: 2048, 256>}, {pipeline_mode = #tpu.pipeline_mode<synchronous>, transform_indices = @transform_2, window_bounds = array<i64: 1, 256>}, {pipeline_mode = #tpu.pipeline_mode<synchronous>, transform_indices = @transform_3, window_bounds = array<i64: 256, 128>}, {pipeline_mode = #tpu.pipeline_mode<synchronous>, transform_indices = @transform_4, window_bounds = array<i64: 1, 128>}, {transform_indices = @transform_5, window_bounds = array<i64: 16, 128>}]} {
    %c0_i32 = arith.constant 0 : i32
    %0 = arith.cmpi eq, %arg1, %c0_i32 : i32
    %1 = arith.extui %0 : i1 to i32
    %c0_i32_0 = arith.constant 0 : i32
    %2 = arith.cmpi ne, %1, %c0_i32_0 : i32
    scf.if %2 {
      %cst_10 = arith.constant 0.000000e+00 : f32
      %12 = vector.broadcast %cst_10 : f32 to vector<16x256xf32>
      %c0_11 = arith.constant 0 : index
      %c0_12 = arith.constant 0 : index
      %13 = vector.load %arg8[%c0_11, %c0_12] : memref<16x256xf32, #tpu.memory_space<vmem>>, vector<16x256xf32>
      tpu.vector_store %arg8[%c0_11, %c0_12], %12 {strides = array<i32>} : memref<16x256xf32, #tpu.memory_space<vmem>>, vector<16x256xf32>,
    } else {
    }
    %c0 = arith.constant 0 : index
    %c0_1 = arith.constant 0 : index
    %3 = vector.load %arg8[%c0, %c0_1] : memref<16x256xf32, #tpu.memory_space<vmem>>, vector<16x256xf32>
    %c0_2 = arith.constant 0 : index
    %c0_3 = arith.constant 0 : index
    %4 = vector.load %arg2[%c0_2, %c0_3] : memref<16x2048xbf16, #tpu.memory_space<vmem>>, vector<16x2048xbf16>
    %c0_4 = arith.constant 0 : index
    %c0_5 = arith.constant 0 : index
    %5 = vector.load %arg3[%c0_4, %c0_5] : memref<2048x256xbf16, #tpu.memory_space<vmem>>, vector<2048x256xbf16>
    %cst = arith.constant dense<0.000000e+00> : vector<16x256xf32>
    %6 = tpu.matmul %4, %5, %cst {dimension_numbers = #tpu.dot_dimension_numbers<[1], [0], [0], [1], [0, 0, 1, 1], [], []>} : vector<16x2048xbf16>, vector<2048x256xbf16>, vector<16x256xf32> -> vector<16x256xf32>
    %7 = arith.addf %3, %6 : vector<16x256xf32>
    %c0_6 = arith.constant 0 : index
    %c0_7 = arith.constant 0 : index
    %8 = vector.load %arg8[%c0_6, %c0_7] : memref<16x256xf32, #tpu.memory_space<vmem>>, vector<16x256xf32>
    tpu.vector_store %arg8[%c0_6, %c0_7], %7 {strides = array<i32>} : memref<16x256xf32, #tpu.memory_space<vmem>>, vector<16x256xf32>,
    %c0_i32_8 = arith.constant 0 : i32
    %9 = arith.cmpi eq, %arg1, %c0_i32_8 : i32
    %10 = arith.extui %9 : i1 to i32
    %c0_i32_9 = arith.constant 0 : i32
    %11 = arith.cmpi ne, %10, %c0_i32_9 : i32
    scf.if %11 {
      %c0_10 = arith.constant 0 : index
      %c0_11 = arith.constant 0 : index
      %12 = vector.load %arg8[%c0_10, %c0_11] : memref<16x256xf32, #tpu.memory_space<vmem>>, vector<16x256xf32>
      %c0_12 = arith.constant 0 : index
      %c0_13 = arith.constant 0 : index
      %13 = vector.load %arg4[%c0_12, %c0_13] : memref<1x256xf32, #tpu.memory_space<vmem>>, vector<1x256xf32>
      %14 = vector.broadcast %13 : vector<1x256xf32> to vector<16x256xf32>
      %15 = arith.addf %12, %14 : vector<16x256xf32>
      %cst_14 = arith.constant 0.000000e+00 : f32
      %16 = vector.broadcast %cst_14 : f32 to vector<16x256xf32>
      %17 = arith.maximumf %15, %16 : vector<16x256xf32>
      %18 = arith.truncf %17 : vector<16x256xf32> to vector<16x256xbf16>
      %c0_15 = arith.constant 0 : index
      %c0_16 = arith.constant 0 : index
      %19 = vector.load %arg5[%c0_15, %c0_16] : memref<256x128xbf16, #tpu.memory_space<vmem>>, vector<256x128xbf16>
      %cst_17 = arith.constant dense<0.000000e+00> : vector<16x128xf32>
      %20 = tpu.matmul %18, %19, %cst_17 {dimension_numbers = #tpu.dot_dimension_numbers<[1], [0], [0], [1], [0, 0, 1, 1], [], []>} : vector<16x256xbf16>, vector<256x128xbf16>, vector<16x128xf32> -> vector<16x128xf32>
      %c0_18 = arith.constant 0 : index
      %c0_19 = arith.constant 0 : index
      %21 = vector.load %arg6[%c0_18, %c0_19] : memref<1x128xf32, #tpu.memory_space<vmem>>, vector<1x128xf32>
      %22 = vector.broadcast %21 : vector<1x128xf32> to vector<16x128xf32>
      %23 = arith.addf %20, %22 : vector<16x128xf32>
      %c0_20 = arith.constant 0 : index
      %c0_21 = arith.constant 0 : index
      %24 = vector.load %arg7[%c0_20, %c0_21] : memref<16x128xf32, #tpu.memory_space<vmem>>, vector<16x128xf32>
      tpu.vector_store %arg7[%c0_20, %c0_21], %23 {strides = array<i32>} : memref<16x128xf32, #tpu.memory_space<vmem>>, vector<16x128xf32>,
    } else {
    }
    return
  }
  func.func @transform_0(%arg0: i32, %arg1: i32) -> (i32, i32) {
    %c0_i32 = arith.constant 0 : i32
    return %arg0, %arg1 : i32, i32
  }
  func.func @transform_1(%arg0: i32, %arg1: i32) -> (i32, i32) {
    %c0_i32 = arith.constant 0 : i32
    %c0_i32_0 = arith.constant 0 : i32
    return %arg1, %c0_i32 : i32, i32
  }
  func.func @transform_2(%arg0: i32, %arg1: i32) -> (i32, i32) {
    %c0_i32 = arith.constant 0 : i32
    %c0_i32_0 = arith.constant 0 : i32
    %c0_i32_1 = arith.constant 0 : i32
    return %c0_i32, %c0_i32_0 : i32, i32
  }
  func.func @transform_3(%arg0: i32, %arg1: i32) -> (i32, i32) {
    %c0_i32 = arith.constant 0 : i32
    %c0_i32_0 = arith.constant 0 : i32
    %c0_i32_1 = arith.constant 0 : i32
    return %c0_i32, %c0_i32_0 : i32, i32
  }
  func.func @transform_4(%arg0: i32, %arg1: i32) -> (i32, i32) {
    %c0_i32 = arith.constant 0 : i32
    %c0_i32_0 = arith.constant 0 : i32
    %c0_i32_1 = arith.constant 0 : i32
    return %c0_i32, %c0_i32_0 : i32, i32
  }
  func.func @transform_5(%arg0: i32, %arg1: i32) -> (i32, i32) {
    %c0_i32 = arith.constant 0 : i32
    %c0_i32_0 = arith.constant 0 : i32
    return %arg0, %c0_i32 : i32, i32
  }
}

</mosaic_0001>

<llo_original>
// kernel: simple_video_classifier_forward.1
$region0: #{simple_video_classifier_forward.1}
  #allocation0 [shape = 'u32[]', space=smem, size = 0x4, offset = 0x4, fixed_abs, tag = 'smem constant byte address 0x4 - core index']
  #allocation1 [shape = 'u32[144,128]{1,0:T(1,128)}', space=vmem, size = 0x12000, scoped, tag = 'internal scratch']
  #allocation2 [shape = 'f32[16,256]{1,0:T(8,128)}', space=vmem, size = 0x4000, scoped, tag = 'scratch operand']
  %s0 = inlined_call_operand.vmem [shape: bf16[16,2048], index: 0, kind: input, shape index: {}]
  %s1 = inlined_call_operand.hbm [shape: bf16[2048,256], index: 1, kind: input, shape index: {}]
  %s2 = inlined_call_operand.vmem [shape: f32[1,256], index: 2, kind: input, shape index: {}]
  %s3 = inlined_call_operand.vmem [shape: bf16[256,128], index: 3, kind: input, shape index: {}]
  %s4 = inlined_call_operand.vmem [shape: f32[1,128], index: 4, kind: input, shape index: {}]
  %s5 = inlined_call_operand.vmem [shape: f32[16,128], index: 5, kind: output, shape index: {}]
  %s6 = sld [smem:[#allocation0]]
  $region42: #{simple_video_classifier_forward.1} parent=0
    _
  %s8 = ssub.s32 1, %s6
  %s9 = scalar_select 0, %s8, %s6
  $region1: #{simple_video_classifier_forward.1} parent=0
    #allocation3 [shape = 'u8[1048576]{0}', space=vmem, size = 0x100000, scoped, tag = 'input window, operand 1, single buffered']
    #allocation4 [shape = 's32[1]{0}', space=sflag, size = 0x4, scoped, tag = 'scoped memory for simple_video_classifier_forward.1']
    %10 = vsyncpa [#allocation4], 0
    // Predicated region
    $region2: #{simple_video_classifier_forward.1} parent=1 // pred_check
      _
    $region3: #{simple_video_classifier_forward.1} parent=1 // pred_check_branch
      %12 = sbr.rel (0) target = $region5
    $region4: #{simple_video_classifier_forward.1} parent=1 // pred_region
      _
    $region5: #{simple_video_classifier_forward.1} parent=1 // pred_fallthru
      _
    // Predicated region
    $region6: #{simple_video_classifier_forward.1} parent=1 // pred_check
      _
    $region7: #{simple_video_classifier_forward.1} parent=1 // pred_check_branch
      %14 = sbr.rel (0) target = $region9
    $region8: #{simple_video_classifier_forward.1} parent=1 // pred_region
      %s16 = ssub.s32 32768, 32768
      %17 = vsyncadd [#allocation4], %s16
      %s18 = sshll.u32 [#allocation3], 4
      %s19 = int_to_ptr.vmem [resolvable:$true] %s18
      %24 = dma.hbm_to_vmem [thread:$0]  %s1, 32768, %s19, [#allocation4], 128, 128, 8
    $region9: #{simple_video_classifier_forward.1} parent=1 // pred_fallthru
      _
    // Predicated region
    $region10: #{simple_video_classifier_forward.1} parent=1 // pred_check
      _
    $region11: #{simple_video_classifier_forward.1} parent=1 // pred_check_branch
      %26 = sbr.rel (0) target = $region13
    $region12: #{simple_video_classifier_forward.1} parent=1 // pred_region
      _
    $region13: #{simple_video_classifier_forward.1} parent=1 // pred_fallthru
      _
    // Predicated region
    $region14: #{simple_video_classifier_forward.1} parent=1 // pred_check
      _
    $region15: #{simple_video_classifier_forward.1} parent=1 // pred_check_branch
      %28 = sbr.rel (0) target = $region17
    $region16: #{simple_video_classifier_forward.1} parent=1 // pred_region
      _
    $region17: #{simple_video_classifier_forward.1} parent=1 // pred_fallthru
      _
    // Predicated region
    $region18: #{simple_video_classifier_forward.1} parent=1 // pred_check
      _
    $region19: #{simple_video_classifier_forward.1} parent=1 // pred_check_branch
      %30 = sbr.rel (0) target = $region21
    $region20: #{simple_video_classifier_forward.1} parent=1 // pred_region
      _
    $region21: #{simple_video_classifier_forward.1} parent=1 // pred_fallthru
      _
    // Predicated region
    $region22: #{simple_video_classifier_forward.1} parent=1 // pred_check
      _
    $region23: #{simple_video_classifier_forward.1} parent=1 // pred_check_branch
      %32 = sbr.rel (0) target = $region25
    $region24: #{simple_video_classifier_forward.1} parent=1 // pred_region
      %33 = dma.done [#allocation4], 32768
    $region25: #{simple_video_classifier_forward.1} parent=1 // pred_fallthru
      _
    %p35 = scmp.eq.s32.totalorder 0, 0
    // Predicated region
    $region26: #{simple_video_classifier_forward.1} parent=1 // pred_check
      %p36 = pneg %p35
    $region27: #{simple_video_classifier_forward.1} parent=1 // pred_check_branch
      %38 = sbr.rel (%p36) target = $region29
    $region28: #{simple_video_classifier_forward.1} parent=1 // pred_region
      %39 = vst [vmem:[#allocation2] sm:$0xff] 0.0
      %40 = vst [vmem:[#allocation2 + $0x8] sm:$0xff] 0.0
      %41 = vst [vmem:[#allocation2 + $0x10] sm:$0xff] 0.0
      %42 = vst [vmem:[#allocation2 + $0x18] sm:$0xff] 0.0
    $region29: #{simple_video_classifier_forward.1} parent=1 // pred_fallthru
      _
    %v43 = vld [vmem:[#allocation2] sm:$0xff]
    %v44 = vld [vmem:[#allocation2 + $0x8] sm:$0xff]
    %v45 = vld [vmem:[#allocation2 + $0x10] sm:$0xff]
    %v46 = vld [vmem:[#allocation2 + $0x18] sm:$0xff]
    %v47 = vld [vmem:[%s0] sm:$0xff]
    %v48 = vld [vmem:[%s0 + $0x8] sm:$0xff]
    %v49 = vld [vmem:[%s0 + $0x10] sm:$0xff]
    %v50 = vld [vmem:[%s0 + $0x18] sm:$0xff]
    %v51 = vld [vmem:[%s0 + $0x20] sm:$0xff]
    %v52 = vld [vmem:[%s0 + $0x28] sm:$0xff]
    %v53 = vld [vmem:[%s0 + $0x30] sm:$0xff]
    %v54 = vld [vmem:[%s0 + $0x38] sm:$0xff]
    %v55 = vld [vmem:[%s0 + $0x40] sm:$0xff]
    %v56 = vld [vmem:[%s0 + $0x48] sm:$0xff]
    %v57 = vld [vmem:[%s0 + $0x50] sm:$0xff]
    %v58 = vld [vmem:[%s0 + $0x58] sm:$0xff]
    %v59 = vld [vmem:[%s0 + $0x60] sm:$0xff]
    %v60 = vld [vmem:[%s0 + $0x68] sm:$0xff]
    %v61 = vld [vmem:[%s0 + $0x70] sm:$0xff]
    %v62 = vld [vmem:[%s0 + $0x78] sm:$0xff]
    %v63 = vld [vmem:[#allocation3] sm:$0xff]
    %v64 = vld [vmem:[#allocation3 + $0x8] sm:$0xff]
    %v65 = vld [vmem:[#allocation3 + $0x10] sm:$0xff]
    %v66 = vld [vmem:[#allocation3 + $0x18] sm:$0xff]
    %v67 = vld [vmem:[#allocation3 + $0x20] sm:$0xff]
    %v68 = vld [vmem:[#allocation3 + $0x28] sm:$0xff]
    %v69 = vld [vmem:[#allocation3 + $0x30] sm:$0xff]
    %v70 = vld [vmem:[#allocation3 + $0x38] sm:$0xff]
    %v71 = vld [vmem:[#allocation3 + $0x40] sm:$0xff]
    %v72 = vld [vmem:[#allocation3 + $0x48] sm:$0xff]
    %v73 = vld [vmem:[#allocation3 + $0x50] sm:$0xff]
    %v74 = vld [vmem:[#allocation3 + $0x58] sm:$0xff]
    %v75 = vld [vmem:[#allocation3 + $0x60] sm:$0xff]
    %v76 = vld [vmem:[#allocation3 + $0x68] sm:$0xff]
    %v77 = vld [vmem:[#allocation3 + $0x70] sm:$0xff]
    %v78 = vld [vmem:[#allocation3 + $0x78] sm:$0xff]
    %v79 = vld [vmem:[#allocation3 + $0x80] sm:$0xff]
    %v80 = vld [vmem:[#allocation3 + $0x88] sm:$0xff]
    %v81 = vld [vmem:[#allocation3 + $0x90] sm:$0xff]
    %v82 = vld [vmem:[#allocation3 + $0x98] sm:$0xff]
    %v83 = vld [vmem:[#allocation3 + $0xa0] sm:$0xff]
    %v84 = vld [vmem:[#allocation3 + $0xa8] sm:$0xff]
    %v85 = vld [vmem:[#allocation3 + $0xb0] sm:$0xff]
    %v86 = vld [vmem:[#allocation3 + $0xb8] sm:$0xff]
    %v87 = vld [vmem:[#allocation3 + $0xc0] sm:$0xff]
    %v88 = vld [vmem:[#allocation3 + $0xc8] sm:$0xff]
    %v89 = vld [vmem:[#allocation3 + $0xd0] sm:$0xff]
    %v90 = vld [vmem:[#allocation3 + $0xd8] sm:$0xff]
    %v91 = vld [vmem:[#allocation3 + $0xe0] sm:$0xff]
    %v92 = vld [vmem:[#allocation3 + $0xe8] sm:$0xff]
    %v93 = vld [vmem:[#allocation3 + $0xf0] sm:$0xff]
    %v94 = vld [vmem:[#allocation3 + $0xf8] sm:$0xff]
    %v95 = vld [vmem:[#allocation3 + $0x100] sm:$0xff]
    %v96 = vld [vmem:[#allocation3 + $0x108] sm:$0xff]
    %v97 = vld [vmem:[#allocation3 + $0x110] sm:$0xff]
    %v98 = vld [vmem:[#allocation3 + $0x118] sm:$0xff]
    %v99 = vld [vmem:[#allocation3 + $0x120] sm:$0xff]
    %v100 = vld [vmem:[#allocation3 + $0x128] sm:$0xff]
    %v101 = vld [vmem:[#allocation3 + $0x130] sm:$0xff]
    %v102 = vld [vmem:[#allocation3 + $0x138] sm:$0xff]
    %v103 = vld [vmem:[#allocation3 + $0x140] sm:$0xff]
    %v104 = vld [vmem:[#allocation3 + $0x148] sm:$0xff]
    %v105 = vld [vmem:[#allocation3 + $0x150] sm:$0xff]
    %v106 = vld [vmem:[#allocation3 + $0x158] sm:$0xff]
    %v107 = vld [vmem:[#allocation3 + $0x160] sm:$0xff]
    %v108 = vld [vmem:[#allocation3 + $0x168] sm:$0xff]
    %v109 = vld [vmem:[#allocation3 + $0x170] sm:$0xff]
    %v110 = vld [vmem:[#allocation3 + $0x178] sm:$0xff]
    %v111 = vld [vmem:[#allocation3 + $0x180] sm:$0xff]
    %v112 = vld [vmem:[#allocation3 + $0x188] sm:$0xff]
    %v113 = vld [vmem:[#allocation3 + $0x190] sm:$0xff]
    %v114 = vld [vmem:[#allocation3 + $0x198] sm:$0xff]
    %v115 = vld [vmem:[#allocation3 + $0x1a0] sm:$0xff]
    %v116 = vld [vmem:[#allocation3 + $0x1a8] sm:$0xff]
    %v117 = vld [vmem:[#allocation3 + $0x1b0] sm:$0xff]
    %v118 = vld [vmem:[#allocation3 + $0x1b8] sm:$0xff]
    %v119 = vld [vmem:[#allocation3 + $0x1c0] sm:$0xff]
    %v120 = vld [vmem:[#allocation3 + $0x1c8] sm:$0xff]
    %v121 = vld [vmem:[#allocation3 + $0x1d0] sm:$0xff]
    %v122 = vld [vmem:[#allocation3 + $0x1d8] sm:$0xff]
    %v123 = vld [vmem:[#allocation3 + $0x1e0] sm:$0xff]
    %v124 = vld [vmem:[#allocation3 + $0x1e8] sm:$0xff]
    %v125 = vld [vmem:[#allocation3 + $0x1f0] sm:$0xff]
    %v126 = vld [vmem:[#allocation3 + $0x1f8] sm:$0xff]
    %v127 = vld [vmem:[#allocation3 + $0x200] sm:$0xff]
    %v128 = vld [vmem:[#allocation3 + $0x208] sm:$0xff]
    %v129 = vld [vmem:[#allocation3 + $0x210] sm:$0xff]
    %v130 = vld [vmem:[#allocation3 + $0x218] sm:$0xff]
    %v131 = vld [vmem:[#allocation3 + $0x220] sm:$0xff]
    %v132 = vld [vmem:[#allocation3 + $0x228] sm:$0xff]
    %v133 = vld [vmem:[#allocation3 + $0x230] sm:$0xff]
    %v134 = vld [vmem:[#allocation3 + $0x238] sm:$0xff]
    %v135 = vld [vmem:[#allocation3 + $0x240] sm:$0xff]
    %v136 = vld [vmem:[#allocation3 + $0x248] sm:$0xff]
    %v137 = vld [vmem:[#allocation3 + $0x250] sm:$0xff]
    %v138 = vld [vmem:[#allocation3 + $0x258] sm:$0xff]
    %v139 = vld [vmem:[#allocation3 + $0x260] sm:$0xff]
    %v140 = vld [vmem:[#allocation3 + $0x268] sm:$0xff]
    %v141 = vld [vmem:[#allocation3 + $0x270] sm:$0xff]
    %v142 = vld [vmem:[#allocation3 + $0x278] sm:$0xff]
    %v143 = vld [vmem:[#allocation3 + $0x280] sm:$0xff]
    %v144 = vld [vmem:[#allocation3 + $0x288] sm:$0xff]
    %v145 = vld [vmem:[#allocation3 + $0x290] sm:$0xff]
    %v146 = vld [vmem:[#allocation3 + $0x298] sm:$0xff]
    %v147 = vld [vmem:[#allocation3 + $0x2a0] sm:$0xff]
    %v148 = vld [vmem:[#allocation3 + $0x2a8] sm:$0xff]
    %v149 = vld [vmem:[#allocation3 + $0x2b0] sm:$0xff]
    %v150 = vld [vmem:[#allocation3 + $0x2b8] sm:$0xff]
    %v151 = vld [vmem:[#allocation3 + $0x2c0] sm:$0xff]
    %v152 = vld [vmem:[#allocation3 + $0x2c8] sm:$0xff]
    %v153 = vld [vmem:[#allocation3 + $0x2d0] sm:$0xff]
    %v154 = vld [vmem:[#allocation3 + $0x2d8] sm:$0xff]
    %v155 = vld [vmem:[#allocation3 + $0x2e0] sm:$0xff]
    %v156 = vld [vmem:[#allocation3 + $0x2e8] sm:$0xff]
    %v157 = vld [vmem:[#allocation3 + $0x2f0] sm:$0xff]
    %v158 = vld [vmem:[#allocation3 + $0x2f8] sm:$0xff]
    %v159 = vld [vmem:[#allocation3 + $0x300] sm:$0xff]
    %v160 = vld [vmem:[#allocation3 + $0x308] sm:$0xff]
    %v161 = vld [vmem:[#allocation3 + $0x310] sm:$0xff]
    %v162 = vld [vmem:[#allocation3 + $0x318] sm:$0xff]
    %v163 = vld [vmem:[#allocation3 + $0x320] sm:$0xff]
    %v164 = vld [vmem:[#allocation3 + $0x328] sm:$0xff]
    %v165 = vld [vmem:[#allocation3 + $0x330] sm:$0xff]
    %v166 = vld [vmem:[#allocation3 + $0x338] sm:$0xff]
    %v167 = vld [vmem:[#allocation3 + $0x340] sm:$0xff]
    %v168 = vld [vmem:[#allocation3 + $0x348] sm:$0xff]
    %v169 = vld [vmem:[#allocation3 + $0x350] sm:$0xff]
    %v170 = vld [vmem:[#allocation3 + $0x358] sm:$0xff]
    %v171 = vld [vmem:[#allocation3 + $0x360] sm:$0xff]
    %v172 = vld [vmem:[#allocation3 + $0x368] sm:$0xff]
    %v173 = vld [vmem:[#allocation3 + $0x370] sm:$0xff]
    %v174 = vld [vmem:[#allocation3 + $0x378] sm:$0xff]
    %v175 = vld [vmem:[#allocation3 + $0x380] sm:$0xff]
    %v176 = vld [vmem:[#allocation3 + $0x388] sm:$0xff]
    %v177 = vld [vmem:[#allocation3 + $0x390] sm:$0xff]
    %v178 = vld [vmem:[#allocation3 + $0x398] sm:$0xff]
    %v179 = vld [vmem:[#allocation3 + $0x3a0] sm:$0xff]
    %v180 = vld [vmem:[#allocation3 + $0x3a8] sm:$0xff]
    %v181 = vld [vmem:[#allocation3 + $0x3b0] sm:$0xff]
    %v182 = vld [vmem:[#allocation3 + $0x3b8] sm:$0xff]
    %v183 = vld [vmem:[#allocation3 + $0x3c0] sm:$0xff]
    %v184 = vld [vmem:[#allocation3 + $0x3c8] sm:$0xff]
    %v185 = vld [vmem:[#allocation3 + $0x3d0] sm:$0xff]
    %v186 = vld [vmem:[#allocation3 + $0x3d8] sm:$0xff]
    %v187 = vld [vmem:[#allocation3 + $0x3e0] sm:$0xff]
    %v188 = vld [vmem:[#allocation3 + $0x3e8] sm:$0xff]
    %v189 = vld [vmem:[#allocation3 + $0x3f0] sm:$0xff]
    %v190 = vld [vmem:[#allocation3 + $0x3f8] sm:$0xff]
    %v191 = vld [vmem:[#allocation3 + $0x400] sm:$0xff]
    %v192 = vld [vmem:[#allocation3 + $0x408] sm:$0xff]
    %v193 = vld [vmem:[#allocation3 + $0x410] sm:$0xff]
    %v194 = vld [vmem:[#allocation3 + $0x418] sm:$0xff]
    %v195 = vld [vmem:[#allocation3 + $0x420] sm:$0xff]
    %v196 = vld [vmem:[#allocation3 + $0x428] sm:$0xff]
    %v197 = vld [vmem:[#allocation3 + $0x430] sm:$0xff]
    %v198 = vld [vmem:[#allocation3 + $0x438] sm:$0xff]
    %v199 = vld [vmem:[#allocation3 + $0x440] sm:$0xff]
    %v200 = vld [vmem:[#allocation3 + $0x448] sm:$0xff]
    %v201 = vld [vmem:[#allocation3 + $0x450] sm:$0xff]
    %v202 = vld [vmem:[#allocation3 + $0x458] sm:$0xff]
    %v203 = vld [vmem:[#allocation3 + $0x460] sm:$0xff]
    %v204 = vld [vmem:[#allocation3 + $0x468] sm:$0xff]
    %v205 = vld [vmem:[#allocation3 + $0x470] sm:$0xff]
    %v206 = vld [vmem:[#allocation3 + $0x478] sm:$0xff]
    %v207 = vld [vmem:[#allocation3 + $0x480] sm:$0xff]
    %v208 = vld [vmem:[#allocation3 + $0x488] sm:$0xff]
    %v209 = vld [vmem:[#allocation3 + $0x490] sm:$0xff]
    %v210 = vld [vmem:[#allocation3 + $0x498] sm:$0xff]
    %v211 = vld [vmem:[#allocation3 + $0x4a0] sm:$0xff]
    %v212 = vld [vmem:[#allocation3 + $0x4a8] sm:$0xff]
    %v213 = vld [vmem:[#allocation3 + $0x4b0] sm:$0xff]
    %v214 = vld [vmem:[#allocation3 + $0x4b8] sm:$0xff]
    %v215 = vld [vmem:[#allocation3 + $0x4c0] sm:$0xff]
    %v216 = vld [vmem:[#allocation3 + $0x4c8] sm:$0xff]
    %v217 = vld [vmem:[#allocation3 + $0x4d0] sm:$0xff]
    %v218 = vld [vmem:[#allocation3 + $0x4d8] sm:$0xff]
    %v219 = vld [vmem:[#allocation3 + $0x4e0] sm:$0xff]
    %v220 = vld [vmem:[#allocation3 + $0x4e8] sm:$0xff]
    %v221 = vld [vmem:[#allocation3 + $0x4f0] sm:$0xff]
    %v222 = vld [vmem:[#allocation3 + $0x4f8] sm:$0xff]
    %v223 = vld [vmem:[#allocation3 + $0x500] sm:$0xff]
    %v224 = vld [vmem:[#allocation3 + $0x508] sm:$0xff]
    %v225 = vld [vmem:[#allocation3 + $0x510] sm:$0xff]
    %v226 = vld [vmem:[#allocation3 + $0x518] sm:$0xff]
    %v227 = vld [vmem:[#allocation3 + $0x520] sm:$0xff]
    %v228 = vld [vmem:[#allocation3 + $0x528] sm:$0xff]
    %v229 = vld [vmem:[#allocation3 + $0x530] sm:$0xff]
    %v230 = vld [vmem:[#allocation3 + $0x538] sm:$0xff]
    %v231 = vld [vmem:[#allocation3 + $0x540] sm:$0xff]
    %v232 = vld [vmem:[#allocation3 + $0x548] sm:$0xff]
    %v233 = vld [vmem:[#allocation3 + $0x550] sm:$0xff]
    %v234 = vld [vmem:[#allocation3 + $0x558] sm:$0xff]
    %v235 = vld [vmem:[#allocation3 + $0x560] sm:$0xff]
    %v236 = vld [vmem:[#allocation3 + $0x568] sm:$0xff]
    %v237 = vld [vmem:[#allocation3 + $0x570] sm:$0xff]
    %v238 = vld [vmem:[#allocation3 + $0x578] sm:$0xff]
    %v239 = vld [vmem:[#allocation3 + $0x580] sm:$0xff]
    %v240 = vld [vmem:[#allocation3 + $0x588] sm:$0xff]
    %v241 = vld [vmem:[#allocation3 + $0x590] sm:$0xff]
    %v242 = vld [vmem:[#allocation3 + $0x598] sm:$0xff]
    %v243 = vld [vmem:[#allocation3 + $0x5a0] sm:$0xff]
    %v244 = vld [vmem:[#allocation3 + $0x5a8] sm:$0xff]
    %v245 = vld [vmem:[#allocation3 + $0x5b0] sm:$0xff]
    %v246 = vld [vmem:[#allocation3 + $0x5b8] sm:$0xff]
    %v247 = vld [vmem:[#allocation3 + $0x5c0] sm:$0xff]
    %v248 = vld [vmem:[#allocation3 + $0x5c8] sm:$0xff]
    %v249 = vld [vmem:[#allocation3 + $0x5d0] sm:$0xff]
    %v250 = vld [vmem:[#allocation3 + $0x5d8] sm:$0xff]
    %v251 = vld [vmem:[#allocation3 + $0x5e0] sm:$0xff]
    %v252 = vld [vmem:[#allocation3 + $0x5e8] sm:$0xff]
    %v253 = vld [vmem:[#allocation3 + $0x5f0] sm:$0xff]
    %v254 = vld [vmem:[#allocation3 + $0x5f8] sm:$0xff]
    %v255 = vld [vmem:[#allocation3 + $0x600] sm:$0xff]
    %v256 = vld [vmem:[#allocation3 + $0x608] sm:$0xff]
    %v257 = vld [vmem:[#allocation3 + $0x610] sm:$0xff]
    %v258 = vld [vmem:[#allocation3 + $0x618] sm:$0xff]
    %v259 = vld [vmem:[#allocation3 + $0x620] sm:$0xff]
    %v260 = vld [vmem:[#allocation3 + $0x628] sm:$0xff]
    %v261 = vld [vmem:[#allocation3 + $0x630] sm:$0xff]
    %v262 = vld [vmem:[#allocation3 + $0x638] sm:$0xff]
    %v263 = vld [vmem:[#allocation3 + $0x640] sm:$0xff]
    %v264 = vld [vmem:[#allocation3 + $0x648] sm:$0xff]
    %v265 = vld [vmem:[#allocation3 + $0x650] sm:$0xff]
    %v266 = vld [vmem:[#allocation3 + $0x658] sm:$0xff]
    %v267 = vld [vmem:[#allocation3 + $0x660] sm:$0xff]
    %v268 = vld [vmem:[#allocation3 + $0x668] sm:$0xff]
    %v269 = vld [vmem:[#allocation3 + $0x670] sm:$0xff]
    %v270 = vld [vmem:[#allocation3 + $0x678] sm:$0xff]
    %v271 = vld [vmem:[#allocation3 + $0x680] sm:$0xff]
    %v272 = vld [vmem:[#allocation3 + $0x688] sm:$0xff]
    %v273 = vld [vmem:[#allocation3 + $0x690] sm:$0xff]
    %v274 = vld [vmem:[#allocation3 + $0x698] sm:$0xff]
    %v275 = vld [vmem:[#allocation3 + $0x6a0] sm:$0xff]
    %v276 = vld [vmem:[#allocation3 + $0x6a8] sm:$0xff]
    %v277 = vld [vmem:[#allocation3 + $0x6b0] sm:$0xff]
    %v278 = vld [vmem:[#allocation3 + $0x6b8] sm:$0xff]
    %v279 = vld [vmem:[#allocation3 + $0x6c0] sm:$0xff]
    %v280 = vld [vmem:[#allocation3 + $0x6c8] sm:$0xff]
    %v281 = vld [vmem:[#allocation3 + $0x6d0] sm:$0xff]
    %v282 = vld [vmem:[#allocation3 + $0x6d8] sm:$0xff]
    %v283 = vld [vmem:[#allocation3 + $0x6e0] sm:$0xff]
    %v284 = vld [vmem:[#allocation3 + $0x6e8] sm:$0xff]
    %v285 = vld [vmem:[#allocation3 + $0x6f0] sm:$0xff]
    %v286 = vld [vmem:[#allocation3 + $0x6f8] sm:$0xff]
    %v287 = vld [vmem:[#allocation3 + $0x700] sm:$0xff]
    %v288 = vld [vmem:[#allocation3 + $0x708] sm:$0xff]
    %v289 = vld [vmem:[#allocation3 + $0x710] sm:$0xff]
    %v290 = vld [vmem:[#allocation3 + $0x718] sm:$0xff]
    %v291 = vld [vmem:[#allocation3 + $0x720] sm:$0xff]
    %v292 = vld [vmem:[#allocation3 + $0x728] sm:$0xff]
    %v293 = vld [vmem:[#allocation3 + $0x730] sm:$0xff]
    %v294 = vld [vmem:[#allocation3 + $0x738] sm:$0xff]
    %v295 = vld [vmem:[#allocation3 + $0x740] sm:$0xff]
    %v296 = vld [vmem:[#allocation3 + $0x748] sm:$0xff]
    %v297 = vld [vmem:[#allocation3 + $0x750] sm:$0xff]
    %v298 = vld [vmem:[#allocation3 + $0x758] sm:$0xff]
    %v299 = vld [vmem:[#allocation3 + $0x760] sm:$0xff]
    %v300 = vld [vmem:[#allocation3 + $0x768] sm:$0xff]
    %v301 = vld [vmem:[#allocation3 + $0x770] sm:$0xff]
    %v302 = vld [vmem:[#allocation3 + $0x778] sm:$0xff]
    %v303 = vld [vmem:[#allocation3 + $0x780] sm:$0xff]
    %v304 = vld [vmem:[#allocation3 + $0x788] sm:$0xff]
    %v305 = vld [vmem:[#allocation3 + $0x790] sm:$0xff]
    %v306 = vld [vmem:[#allocation3 + $0x798] sm:$0xff]
    %v307 = vld [vmem:[#allocation3 + $0x7a0] sm:$0xff]
    %v308 = vld [vmem:[#allocation3 + $0x7a8] sm:$0xff]
    %v309 = vld [vmem:[#allocation3 + $0x7b0] sm:$0xff]
    %v310 = vld [vmem:[#allocation3 + $0x7b8] sm:$0xff]
    %v311 = vld [vmem:[#allocation3 + $0x7c0] sm:$0xff]
    %v312 = vld [vmem:[#allocation3 + $0x7c8] sm:$0xff]
    %v313 = vld [vmem:[#allocation3 + $0x7d0] sm:$0xff]
    %v314 = vld [vmem:[#allocation3 + $0x7d8] sm:$0xff]
    %v315 = vld [vmem:[#allocation3 + $0x7e0] sm:$0xff]
    %v316 = vld [vmem:[#allocation3 + $0x7e8] sm:$0xff]
    %v317 = vld [vmem:[#allocation3 + $0x7f0] sm:$0xff]
    %v318 = vld [vmem:[#allocation3 + $0x7f8] sm:$0xff]
    %v335 = vunpack.c.l.b16 %v47
    %v336 = vunpack.c.h.b16 %v47
    %v337 = vunpack.c.l.b16 %v48
    %v338 = vunpack.c.h.b16 %v48
    %v339 = vunpack.c.l.b16 %v49
    %v340 = vunpack.c.h.b16 %v49
    %v341 = vunpack.c.l.b16 %v50
    %v342 = vunpack.c.h.b16 %v50
    %v343 = vunpack.c.l.b16 %v51
    %v344 = vunpack.c.h.b16 %v51
    %v345 = vunpack.c.l.b16 %v52
    %v346 = vunpack.c.h.b16 %v52
    %v347 = vunpack.c.l.b16 %v53
    %v348 = vunpack.c.h.b16 %v53
    %v349 = vunpack.c.l.b16 %v54
    %v350 = vunpack.c.h.b16 %v54
    %v351 = vunpack.c.l.b16 %v55
    %v352 = vunpack.c.h.b16 %v55
    %v353 = vunpack.c.l.b16 %v56
    %v354 = vunpack.c.h.b16 %v56
    %v355 = vunpack.c.l.b16 %v57
    %v356 = vunpack.c.h.b16 %v57
    %v357 = vunpack.c.l.b16 %v58
    %v358 = vunpack.c.h.b16 %v58
    %v359 = vunpack.c.l.b16 %v59
    %v360 = vunpack.c.h.b16 %v59
    %v361 = vunpack.c.l.b16 %v60
    %v362 = vunpack.c.h.b16 %v60
    %v363 = vunpack.c.l.b16 %v61
    %v364 = vunpack.c.h.b16 %v61
    %v365 = vunpack.c.l.b16 %v62
    %v366 = vunpack.c.h.b16 %v62
    %v367 = vpack.c.b16 %v351, %v335
    %v368 = vpack.c.b16 %v352, %v336
    %v369 = vpack.c.b16 %v353, %v337
    %v370 = vpack.c.b16 %v354, %v338
    %v371 = vpack.c.b16 %v355, %v339
    %v372 = vpack.c.b16 %v356, %v340
    %v373 = vpack.c.b16 %v357, %v341
    %v374 = vpack.c.b16 %v358, %v342
    %v375 = vpack.c.b16 %v359, %v343
    %v376 = vpack.c.b16 %v360, %v344
    %v377 = vpack.c.b16 %v361, %v345
    %v378 = vpack.c.b16 %v362, %v346
    %v379 = vpack.c.b16 %v363, %v347
    %v380 = vpack.c.b16 %v364, %v348
    %v381 = vpack.c.b16 %v365, %v349
    %v382 = vpack.c.b16 %v366, %v350
    %v655 = vunpack.c.l.b16 %v63
    %v656 = vunpack.c.h.b16 %v63
    %v657 = vunpack.c.l.b16 %v64
    %v658 = vunpack.c.h.b16 %v64
    %v659 = vunpack.c.l.b16 %v65
    %v660 = vunpack.c.h.b16 %v65
    %v661 = vunpack.c.l.b16 %v66
    %v662 = vunpack.c.h.b16 %v66
    %v663 = vunpack.c.l.b16 %v67
    %v664 = vunpack.c.h.b16 %v67
    %v665 = vunpack.c.l.b16 %v68
    %v666 = vunpack.c.h.b16 %v68
    %v667 = vunpack.c.l.b16 %v69
    %v668 = vunpack.c.h.b16 %v69
    %v669 = vunpack.c.l.b16 %v70
    %v670 = vunpack.c.h.b16 %v70
    %v671 = vunpack.c.l.b16 %v71
    %v672 = vunpack.c.h.b16 %v71
    %v673 = vunpack.c.l.b16 %v72
    %v674 = vunpack.c.h.b16 %v72
    %v675 = vunpack.c.l.b16 %v73
    %v676 = vunpack.c.h.b16 %v73
    %v677 = vunpack.c.l.b16 %v74
    %v678 = vunpack.c.h.b16 %v74
    %v679 = vunpack.c.l.b16 %v75
    %v680 = vunpack.c.h.b16 %v75
    %v681 = vunpack.c.l.b16 %v76
    %v682 = vunpack.c.h.b16 %v76
    %v683 = vunpack.c.l.b16 %v77
    %v684 = vunpack.c.h.b16 %v77
    %v685 = vunpack.c.l.b16 %v78
    %v686 = vunpack.c.h.b16 %v78
    %v687 = vunpack.c.l.b16 %v79
    %v688 = vunpack.c.h.b16 %v79
    %v689 = vunpack.c.l.b16 %v80
    %v690 = vunpack.c.h.b16 %v80
    %v691 = vunpack.c.l.b16 %v81
    %v692 = vunpack.c.h.b16 %v81
    %v693 = vunpack.c.l.b16 %v82
    %v694 = vunpack.c.h.b16 %v82
    %v695 = vunpack.c.l.b16 %v83
    %v696 = vunpack.c.h.b16 %v83
    %v697 = vunpack.c.l.b16 %v84
    %v698 = vunpack.c.h.b16 %v84
    %v699 = vunpack.c.l.b16 %v85
    %v700 = vunpack.c.h.b16 %v85
    %v701 = vunpack.c.l.b16 %v86
    %v702 = vunpack.c.h.b16 %v86
    %v703 = vunpack.c.l.b16 %v87
    %v704 = vunpack.c.h.b16 %v87
    %v705 = vunpack.c.l.b16 %v88
    %v706 = vunpack.c.h.b16 %v88
    %v707 = vunpack.c.l.b16 %v89
    %v708 = vunpack.c.h.b16 %v89
    %v709 = vunpack.c.l.b16 %v90
    %v710 = vunpack.c.h.b16 %v90
    %v711 = vunpack.c.l.b16 %v91
    %v712 = vunpack.c.h.b16 %v91
    %v713 = vunpack.c.l.b16 %v92
    %v714 = vunpack.c.h.b16 %v92
    %v715 = vunpack.c.l.b16 %v93
    %v716 = vunpack.c.h.b16 %v93
    %v717 = vunpack.c.l.b16 %v94
    %v718 = vunpack.c.h.b16 %v94
    %v719 = vunpack.c.l.b16 %v95
    %v720 = vunpack.c.h.b16 %v95
    %v721 = vunpack.c.l.b16 %v96
    %v722 = vunpack.c.h.b16 %v96
    %v723 = vunpack.c.l.b16 %v97
    %v724 = vunpack.c.h.b16 %v97
    %v725 = vunpack.c.l.b16 %v98
    %v726 = vunpack.c.h.b16 %v98
    %v727 = vunpack.c.l.b16 %v99
    %v728 = vunpack.c.h.b16 %v99
    %v729 = vunpack.c.l.b16 %v100
    %v730 = vunpack.c.h.b16 %v100
    %v731 = vunpack.c.l.b16 %v101
    %v732 = vunpack.c.h.b16 %v101
    %v733 = vunpack.c.l.b16 %v102
    %v734 = vunpack.c.h.b16 %v102
    %v735 = vunpack.c.l.b16 %v103
    %v736 = vunpack.c.h.b16 %v103
    %v737 = vunpack.c.l.b16 %v104
    %v738 = vunpack.c.h.b16 %v104
    %v739 = vunpack.c.l.b16 %v105
    %v740 = vunpack.c.h.b16 %v105
    %v741 = vunpack.c.l.b16 %v106
    %v742 = vunpack.c.h.b16 %v106
    %v743 = vunpack.c.l.b16 %v107
    %v744 = vunpack.c.h.b16 %v107
    %v745 = vunpack.c.l.b16 %v108
    %v746 = vunpack.c.h.b16 %v108
    %v747 = vunpack.c.l.b16 %v109
    %v748 = vunpack.c.h.b16 %v109
    %v749 = vunpack.c.l.b16 %v110
    %v750 = vunpack.c.h.b16 %v110
    %v751 = vunpack.c.l.b16 %v111
    %v752 = vunpack.c.h.b16 %v111
    %v753 = vunpack.c.l.b16 %v112
    %v754 = vunpack.c.h.b16 %v112
    %v755 = vunpack.c.l.b16 %v113
    %v756 = vunpack.c.h.b16 %v113
    %v757 = vunpack.c.l.b16 %v114
    %v758 = vunpack.c.h.b16 %v114
    %v759 = vunpack.c.l.b16 %v115
    %v760 = vunpack.c.h.b16 %v115
    %v761 = vunpack.c.l.b16 %v116
    %v762 = vunpack.c.h.b16 %v116
    %v763 = vunpack.c.l.b16 %v117
    %v764 = vunpack.c.h.b16 %v117
    %v765 = vunpack.c.l.b16 %v118
    %v766 = vunpack.c.h.b16 %v118
    %v767 = vunpack.c.l.b16 %v119
    %v768 = vunpack.c.h.b16 %v119
    %v769 = vunpack.c.l.b16 %v120
    %v770 = vunpack.c.h.b16 %v120
    %v771 = vunpack.c.l.b16 %v121
    %v772 = vunpack.c.h.b16 %v121
    %v773 = vunpack.c.l.b16 %v122
    %v774 = vunpack.c.h.b16 %v122
    %v775 = vunpack.c.l.b16 %v123
    %v776 = vunpack.c.h.b16 %v123
    %v777 = vunpack.c.l.b16 %v124
    %v778 = vunpack.c.h.b16 %v124
    %v779 = vunpack.c.l.b16 %v125
    %v780 = vunpack.c.h.b16 %v125
    %v781 = vunpack.c.l.b16 %v126
    %v782 = vunpack.c.h.b16 %v126
    %v783 = vunpack.c.l.b16 %v127
    %v784 = vunpack.c.h.b16 %v127
    %v785 = vunpack.c.l.b16 %v128
    %v786 = vunpack.c.h.b16 %v128
    %v787 = vunpack.c.l.b16 %v129
    %v788 = vunpack.c.h.b16 %v129
    %v789 = vunpack.c.l.b16 %v130
    %v790 = vunpack.c.h.b16 %v130
    %v791 = vunpack.c.l.b16 %v131
    %v792 = vunpack.c.h.b16 %v131
    %v793 = vunpack.c.l.b16 %v132
    %v794 = vunpack.c.h.b16 %v132
    %v795 = vunpack.c.l.b16 %v133
    %v796 = vunpack.c.h.b16 %v133
    %v797 = vunpack.c.l.b16 %v134
    %v798 = vunpack.c.h.b16 %v134
    %v799 = vunpack.c.l.b16 %v135
    %v800 = vunpack.c.h.b16 %v135
    %v801 = vunpack.c.l.b16 %v136
    %v802 = vunpack.c.h.b16 %v136
    %v803 = vunpack.c.l.b16 %v137
    %v804 = vunpack.c.h.b16 %v137
    %v805 = vunpack.c.l.b16 %v138
    %v806 = vunpack.c.h.b16 %v138
    %v807 = vunpack.c.l.b16 %v139
    %v808 = vunpack.c.h.b16 %v139
    %v809 = vunpack.c.l.b16 %v140
    %v810 = vunpack.c.h.b16 %v140
    %v811 = vunpack.c.l.b16 %v141
    %v812 = vunpack.c.h.b16 %v141
    %v813 = vunpack.c.l.b16 %v142
    %v814 = vunpack.c.h.b16 %v142
    %v815 = vunpack.c.l.b16 %v143
    %v816 = vunpack.c.h.b16 %v143
    %v817 = vunpack.c.l.b16 %v144
    %v818 = vunpack.c.h.b16 %v144
    %v819 = vunpack.c.l.b16 %v145
    %v820 = vunpack.c.h.b16 %v145
    %v821 = vunpack.c.l.b16 %v146
    %v822 = vunpack.c.h.b16 %v146
    %v823 = vunpack.c.l.b16 %v147
    %v824 = vunpack.c.h.b16 %v147
    %v825 = vunpack.c.l.b16 %v148
    %v826 = vunpack.c.h.b16 %v148
    %v827 = vunpack.c.l.b16 %v149
    %v828 = vunpack.c.h.b16 %v149
    %v829 = vunpack.c.l.b16 %v150
    %v830 = vunpack.c.h.b16 %v150
    %v831 = vunpack.c.l.b16 %v151
    %v832 = vunpack.c.h.b16 %v151
    %v833 = vunpack.c.l.b16 %v152
    %v834 = vunpack.c.h.b16 %v152
    %v835 = vunpack.c.l.b16 %v153
    %v836 = vunpack.c.h.b16 %v153
    %v837 = vunpack.c.l.b16 %v154
    %v838 = vunpack.c.h.b16 %v154
    %v839 = vunpack.c.l.b16 %v155
    %v840 = vunpack.c.h.b16 %v155
    %v841 = vunpack.c.l.b16 %v156
    %v842 = vunpack.c.h.b16 %v156
    %v843 = vunpack.c.l.b16 %v157
    %v844 = vunpack.c.h.b16 %v157
    %v845 = vunpack.c.l.b16 %v158
    %v846 = vunpack.c.h.b16 %v158
    %v847 = vunpack.c.l.b16 %v159
    %v848 = vunpack.c.h.b16 %v159
    %v849 = vunpack.c.l.b16 %v160
    %v850 = vunpack.c.h.b16 %v160
    %v851 = vunpack.c.l.b16 %v161
    %v852 = vunpack.c.h.b16 %v161
    %v853 = vunpack.c.l.b16 %v162
    %v854 = vunpack.c.h.b16 %v162
    %v855 = vunpack.c.l.b16 %v163
    %v856 = vunpack.c.h.b16 %v163
    %v857 = vunpack.c.l.b16 %v164
    %v858 = vunpack.c.h.b16 %v164
    %v859 = vunpack.c.l.b16 %v165
    %v860 = vunpack.c.h.b16 %v165
    %v861 = vunpack.c.l.b16 %v166
    %v862 = vunpack.c.h.b16 %v166
    %v863 = vunpack.c.l.b16 %v167
    %v864 = vunpack.c.h.b16 %v167
    %v865 = vunpack.c.l.b16 %v168
    %v866 = vunpack.c.h.b16 %v168
    %v867 = vunpack.c.l.b16 %v169
    %v868 = vunpack.c.h.b16 %v169
    %v869 = vunpack.c.l.b16 %v170
    %v870 = vunpack.c.h.b16 %v170
    %v871 = vunpack.c.l.b16 %v171
    %v872 = vunpack.c.h.b16 %v171
    %v873 = vunpack.c.l.b16 %v172
    %v874 = vunpack.c.h.b16 %v172
    %v875 = vunpack.c.l.b16 %v173
    %v876 = vunpack.c.h.b16 %v173
    %v877 = vunpack.c.l.b16 %v174
    %v878 = vunpack.c.h.b16 %v174
    %v879 = vunpack.c.l.b16 %v175
    %v880 = vunpack.c.h.b16 %v175
    %v881 = vunpack.c.l.b16 %v176
    %v882 = vunpack.c.h.b16 %v176
    %v883 = vunpack.c.l.b16 %v177
    %v884 = vunpack.c.h.b16 %v177
    %v885 = vunpack.c.l.b16 %v178
    %v886 = vunpack.c.h.b16 %v178
    %v887 = vunpack.c.l.b16 %v179
    %v888 = vunpack.c.h.b16 %v179
    %v889 = vunpack.c.l.b16 %v180
    %v890 = vunpack.c.h.b16 %v180
    %v891 = vunpack.c.l.b16 %v181
    %v892 = vunpack.c.h.b16 %v181
    %v893 = vunpack.c.l.b16 %v182
    %v894 = vunpack.c.h.b16 %v182
    %v895 = vunpack.c.l.b16 %v183
    %v896 = vunpack.c.h.b16 %v183
    %v897 = vunpack.c.l.b16 %v184
    %v898 = vunpack.c.h.b16 %v184
    %v899 = vunpack.c.l.b16 %v185
    %v900 = vunpack.c.h.b16 %v185
    %v901 = vunpack.c.l.b16 %v186
    %v902 = vunpack.c.h.b16 %v186
    %v903 = vunpack.c.l.b16 %v187
    %v904 = vunpack.c.h.b16 %v187
    %v905 = vunpack.c.l.b16 %v188
    %v906 = vunpack.c.h.b16 %v188
    %v907 = vunpack.c.l.b16 %v189
    %v908 = vunpack.c.h.b16 %v189
    %v909 = vunpack.c.l.b16 %v190
    %v910 = vunpack.c.h.b16 %v190
    %v911 = vunpack.c.l.b16 %v191
    %v912 = vunpack.c.h.b16 %v191
    %v913 = vunpack.c.l.b16 %v192
    %v914 = vunpack.c.h.b16 %v192
    %v915 = vunpack.c.l.b16 %v193
    %v916 = vunpack.c.h.b16 %v193
    %v917 = vunpack.c.l.b16 %v194
    %v918 = vunpack.c.h.b16 %v194
    %v919 = vunpack.c.l.b16 %v195
    %v920 = vunpack.c.h.b16 %v195
    %v921 = vunpack.c.l.b16 %v196
    %v922 = vunpack.c.h.b16 %v196
    %v923 = vunpack.c.l.b16 %v197
    %v924 = vunpack.c.h.b16 %v197
    %v925 = vunpack.c.l.b16 %v198
    %v926 = vunpack.c.h.b16 %v198
    %v927 = vunpack.c.l.b16 %v199
    %v928 = vunpack.c.h.b16 %v199
    %v929 = vunpack.c.l.b16 %v200
    %v930 = vunpack.c.h.b16 %v200
    %v931 = vunpack.c.l.b16 %v201
    %v932 = vunpack.c.h.b16 %v201
    %v933 = vunpack.c.l.b16 %v202
    %v934 = vunpack.c.h.b16 %v202
    %v935 = vunpack.c.l.b16 %v203
    %v936 = vunpack.c.h.b16 %v203
    %v937 = vunpack.c.l.b16 %v204
    %v938 = vunpack.c.h.b16 %v204
    %v939 = vunpack.c.l.b16 %v205
    %v940 = vunpack.c.h.b16 %v205
    %v941 = vunpack.c.l.b16 %v206
    %v942 = vunpack.c.h.b16 %v206
    %v943 = vunpack.c.l.b16 %v207
    %v944 = vunpack.c.h.b16 %v207
    %v945 = vunpack.c.l.b16 %v208
    %v946 = vunpack.c.h.b16 %v208
    %v947 = vunpack.c.l.b16 %v209
    %v948 = vunpack.c.h.b16 %v209
    %v949 = vunpack.c.l.b16 %v210
    %v950 = vunpack.c.h.b16 %v210
    %v951 = vunpack.c.l.b16 %v211
    %v952 = vunpack.c.h.b16 %v211
    %v953 = vunpack.c.l.b16 %v212
    %v954 = vunpack.c.h.b16 %v212
    %v955 = vunpack.c.l.b16 %v213
    %v956 = vunpack.c.h.b16 %v213
    %v957 = vunpack.c.l.b16 %v214
    %v958 = vunpack.c.h.b16 %v214
    %v959 = vunpack.c.l.b16 %v215
    %v960 = vunpack.c.h.b16 %v215
    %v961 = vunpack.c.l.b16 %v216
    %v962 = vunpack.c.h.b16 %v216
    %v963 = vunpack.c.l.b16 %v217
    %v964 = vunpack.c.h.b16 %v217
    %v965 = vunpack.c.l.b16 %v218
    %v966 = vunpack.c.h.b16 %v218
    %v967 = vunpack.c.l.b16 %v219
    %v968 = vunpack.c.h.b16 %v219
    %v969 = vunpack.c.l.b16 %v220
    %v970 = vunpack.c.h.b16 %v220
    %v971 = vunpack.c.l.b16 %v221
    %v972 = vunpack.c.h.b16 %v221
    %v973 = vunpack.c.l.b16 %v222
    %v974 = vunpack.c.h.b16 %v222
    %v975 = vunpack.c.l.b16 %v223
    %v976 = vunpack.c.h.b16 %v223
    %v977 = vunpack.c.l.b16 %v224
    %v978 = vunpack.c.h.b16 %v224
    %v979 = vunpack.c.l.b16 %v225
    %v980 = vunpack.c.h.b16 %v225
    %v981 = vunpack.c.l.b16 %v226
    %v982 = vunpack.c.h.b16 %v226
    %v983 = vunpack.c.l.b16 %v227
    %v984 = vunpack.c.h.b16 %v227
    %v985 = vunpack.c.l.b16 %v228
    %v986 = vunpack.c.h.b16 %v228
    %v987 = vunpack.c.l.b16 %v229
    %v988 = vunpack.c.h.b16 %v229
    %v989 = vunpack.c.l.b16 %v230
    %v990 = vunpack.c.h.b16 %v230
    %v991 = vunpack.c.l.b16 %v231
    %v992 = vunpack.c.h.b16 %v231
    %v993 = vunpack.c.l.b16 %v232
    %v994 = vunpack.c.h.b16 %v232
    %v995 = vunpack.c.l.b16 %v233
    %v996 = vunpack.c.h.b16 %v233
    %v997 = vunpack.c.l.b16 %v234
    %v998 = vunpack.c.h.b16 %v234
    %v999 = vunpack.c.l.b16 %v235
    %v1000 = vunpack.c.h.b16 %v235
    %v1001 = vunpack.c.l.b16 %v236
    %v1002 = vunpack.c.h.b16 %v236
    %v1003 = vunpack.c.l.b16 %v237
    %v1004 = vunpack.c.h.b16 %v237
    %v1005 = vunpack.c.l.b16 %v238
    %v1006 = vunpack.c.h.b16 %v238
    %v1007 = vunpack.c.l.b16 %v239
    %v1008 = vunpack.c.h.b16 %v239
    %v1009 = vunpack.c.l.b16 %v240
    %v1010 = vunpack.c.h.b16 %v240
    %v1011 = vunpack.c.l.b16 %v241
    %v1012 = vunpack.c.h.b16 %v241
    %v1013 = vunpack.c.l.b16 %v242
    %v1014 = vunpack.c.h.b16 %v242
    %v1015 = vunpack.c.l.b16 %v243
    %v1016 = vunpack.c.h.b16 %v243
    %v1017 = vunpack.c.l.b16 %v244
    %v1018 = vunpack.c.h.b16 %v244
    %v1019 = vunpack.c.l.b16 %v245
    %v1020 = vunpack.c.h.b16 %v245
    %v1021 = vunpack.c.l.b16 %v246
    %v1022 = vunpack.c.h.b16 %v246
    %v1023 = vunpack.c.l.b16 %v247
    %v1024 = vunpack.c.h.b16 %v247
    %v1025 = vunpack.c.l.b16 %v248
    %v1026 = vunpack.c.h.b16 %v248
    %v1027 = vunpack.c.l.b16 %v249
    %v1028 = vunpack.c.h.b16 %v249
    %v1029 = vunpack.c.l.b16 %v250
    %v1030 = vunpack.c.h.b16 %v250
    %v1031 = vunpack.c.l.b16 %v251
    %v1032 = vunpack.c.h.b16 %v251
    %v1033 = vunpack.c.l.b16 %v252
    %v1034 = vunpack.c.h.b16 %v252
    %v1035 = vunpack.c.l.b16 %v253
    %v1036 = vunpack.c.h.b16 %v253
    %v1037 = vunpack.c.l.b16 %v254
    %v1038 = vunpack.c.h.b16 %v254
    %v1039 = vunpack.c.l.b16 %v255
    %v1040 = vunpack.c.h.b16 %v255
    %v1041 = vunpack.c.l.b16 %v256
    %v1042 = vunpack.c.h.b16 %v256
    %v1043 = vunpack.c.l.b16 %v257
    %v1044 = vunpack.c.h.b16 %v257
    %v1045 = vunpack.c.l.b16 %v258
    %v1046 = vunpack.c.h.b16 %v258
    %v1047 = vunpack.c.l.b16 %v259
    %v1048 = vunpack.c.h.b16 %v259
    %v1049 = vunpack.c.l.b16 %v260
    %v1050 = vunpack.c.h.b16 %v260
    %v1051 = vunpack.c.l.b16 %v261
    %v1052 = vunpack.c.h.b16 %v261
    %v1053 = vunpack.c.l.b16 %v262
    %v1054 = vunpack.c.h.b16 %v262
    %v1055 = vunpack.c.l.b16 %v263
    %v1056 = vunpack.c.h.b16 %v263
    %v1057 = vunpack.c.l.b16 %v264
    %v1058 = vunpack.c.h.b16 %v264
    %v1059 = vunpack.c.l.b16 %v265
    %v1060 = vunpack.c.h.b16 %v265
    %v1061 = vunpack.c.l.b16 %v266
    %v1062 = vunpack.c.h.b16 %v266
    %v1063 = vunpack.c.l.b16 %v267
    %v1064 = vunpack.c.h.b16 %v267
    %v1065 = vunpack.c.l.b16 %v268
    %v1066 = vunpack.c.h.b16 %v268
    %v1067 = vunpack.c.l.b16 %v269
    %v1068 = vunpack.c.h.b16 %v269
    %v1069 = vunpack.c.l.b16 %v270
    %v1070 = vunpack.c.h.b16 %v270
    %v1071 = vunpack.c.l.b16 %v271
    %v1072 = vunpack.c.h.b16 %v271
    %v1073 = vunpack.c.l.b16 %v272
    %v1074 = vunpack.c.h.b16 %v272
    %v1075 = vunpack.c.l.b16 %v273
    %v1076 = vunpack.c.h.b16 %v273
    %v1077 = vunpack.c.l.b16 %v274
    %v1078 = vunpack.c.h.b16 %v274
    %v1079 = vunpack.c.l.b16 %v275
    %v1080 = vunpack.c.h.b16 %v275
    %v1081 = vunpack.c.l.b16 %v276
    %v1082 = vunpack.c.h.b16 %v276
    %v1083 = vunpack.c.l.b16 %v277
    %v1084 = vunpack.c.h.b16 %v277
    %v1085 = vunpack.c.l.b16 %v278
    %v1086 = vunpack.c.h.b16 %v278
    %v1087 = vunpack.c.l.b16 %v279
    %v1088 = vunpack.c.h.b16 %v279
    %v1089 = vunpack.c.l.b16 %v280
    %v1090 = vunpack.c.h.b16 %v280
    %v1091 = vunpack.c.l.b16 %v281
    %v1092 = vunpack.c.h.b16 %v281
    %v1093 = vunpack.c.l.b16 %v282
    %v1094 = vunpack.c.h.b16 %v282
    %v1095 = vunpack.c.l.b16 %v283
    %v1096 = vunpack.c.h.b16 %v283
    %v1097 = vunpack.c.l.b16 %v284
    %v1098 = vunpack.c.h.b16 %v284
    %v1099 = vunpack.c.l.b16 %v285
    %v1100 = vunpack.c.h.b16 %v285
    %v1101 = vunpack.c.l.b16 %v286
    %v1102 = vunpack.c.h.b16 %v286
    %v1103 = vunpack.c.l.b16 %v287
    %v1104 = vunpack.c.h.b16 %v287
    %v1105 = vunpack.c.l.b16 %v288
    %v1106 = vunpack.c.h.b16 %v288
    %v1107 = vunpack.c.l.b16 %v289
    %v1108 = vunpack.c.h.b16 %v289
    %v1109 = vunpack.c.l.b16 %v290
    %v1110 = vunpack.c.h.b16 %v290
    %v1111 = vunpack.c.l.b16 %v291
    %v1112 = vunpack.c.h.b16 %v291
    %v1113 = vunpack.c.l.b16 %v292
    %v1114 = vunpack.c.h.b16 %v292
    %v1115 = vunpack.c.l.b16 %v293
    %v1116 = vunpack.c.h.b16 %v293
    %v1117 = vunpack.c.l.b16 %v294
    %v1118 = vunpack.c.h.b16 %v294
    %v1119 = vunpack.c.l.b16 %v295
    %v1120 = vunpack.c.h.b16 %v295
    %v1121 = vunpack.c.l.b16 %v296
    %v1122 = vunpack.c.h.b16 %v296
    %v1123 = vunpack.c.l.b16 %v297
    %v1124 = vunpack.c.h.b16 %v297
    %v1125 = vunpack.c.l.b16 %v298
    %v1126 = vunpack.c.h.b16 %v298
    %v1127 = vunpack.c.l.b16 %v299
    %v1128 = vunpack.c.h.b16 %v299
    %v1129 = vunpack.c.l.b16 %v300
    %v1130 = vunpack.c.h.b16 %v300
    %v1131 = vunpack.c.l.b16 %v301
    %v1132 = vunpack.c.h.b16 %v301
    %v1133 = vunpack.c.l.b16 %v302
    %v1134 = vunpack.c.h.b16 %v302
    %v1135 = vunpack.c.l.b16 %v303
    %v1136 = vunpack.c.h.b16 %v303
    %v1137 = vunpack.c.l.b16 %v304
    %v1138 = vunpack.c.h.b16 %v304
    %v1139 = vunpack.c.l.b16 %v305
    %v1140 = vunpack.c.h.b16 %v305
    %v1141 = vunpack.c.l.b16 %v306
    %v1142 = vunpack.c.h.b16 %v306
    %v1143 = vunpack.c.l.b16 %v307
    %v1144 = vunpack.c.h.b16 %v307
    %v1145 = vunpack.c.l.b16 %v308
    %v1146 = vunpack.c.h.b16 %v308
    %v1147 = vunpack.c.l.b16 %v309
    %v1148 = vunpack.c.h.b16 %v309
    %v1149 = vunpack.c.l.b16 %v310
    %v1150 = vunpack.c.h.b16 %v310
    %v1151 = vunpack.c.l.b16 %v311
    %v1152 = vunpack.c.h.b16 %v311
    %v1153 = vunpack.c.l.b16 %v312
    %v1154 = vunpack.c.h.b16 %v312
    %v1155 = vunpack.c.l.b16 %v313
    %v1156 = vunpack.c.h.b16 %v313
    %v1157 = vunpack.c.l.b16 %v314
    %v1158 = vunpack.c.h.b16 %v314
    %v1159 = vunpack.c.l.b16 %v315
    %v1160 = vunpack.c.h.b16 %v315
    %v1161 = vunpack.c.l.b16 %v316
    %v1162 = vunpack.c.h.b16 %v316
    %v1163 = vunpack.c.l.b16 %v317
    %v1164 = vunpack.c.h.b16 %v317
    %v1165 = vunpack.c.l.b16 %v318
    %v1166 = vunpack.c.h.b16 %v318
    %v1167 = vpack.c.b16 %v657, %v655
    %v1168 = vpack.c.b16 %v658, %v656
    %v1169 = vpack.c.b16 %v661, %v659
    %v1170 = vpack.c.b16 %v662, %v660
    %v1171 = vpack.c.b16 %v665, %v663
    %v1172 = vpack.c.b16 %v666, %v664
    %v1173 = vpack.c.b16 %v669, %v667
    %v1174 = vpack.c.b16 %v670, %v668
    %v1175 = vpack.c.b16 %v673, %v671
    %v1176 = vpack.c.b16 %v674, %v672
    %v1177 = vpack.c.b16 %v677, %v675
    %v1178 = vpack.c.b16 %v678, %v676
    %v1179 = vpack.c.b16 %v681, %v679
    %v1180 = vpack.c.b16 %v682, %v680
    %v1181 = vpack.c.b16 %v685, %v683
    %v1182 = vpack.c.b16 %v686, %v684
    %v1183 = vpack.c.b16 %v689, %v687
    %v1184 = vpack.c.b16 %v690, %v688
    %v1185 = vpack.c.b16 %v693, %v691
    %v1186 = vpack.c.b16 %v694, %v692
    %v1187 = vpack.c.b16 %v697, %v695
    %v1188 = vpack.c.b16 %v698, %v696
    %v1189 = vpack.c.b16 %v701, %v699
    %v1190 = vpack.c.b16 %v702, %v700
    %v1191 = vpack.c.b16 %v705, %v703
    %v1192 = vpack.c.b16 %v706, %v704
    %v1193 = vpack.c.b16 %v709, %v707
    %v1194 = vpack.c.b16 %v710, %v708
    %v1195 = vpack.c.b16 %v713, %v711
    %v1196 = vpack.c.b16 %v714, %v712
    %v1197 = vpack.c.b16 %v717, %v715
    %v1198 = vpack.c.b16 %v718, %v716
    %v1199 = vpack.c.b16 %v721, %v719
    %v1200 = vpack.c.b16 %v722, %v720
    %v1201 = vpack.c.b16 %v725, %v723
    %v1202 = vpack.c.b16 %v726, %v724
    %v1203 = vpack.c.b16 %v729, %v727
    %v1204 = vpack.c.b16 %v730, %v728
    %v1205 = vpack.c.b16 %v733, %v731
    %v1206 = vpack.c.b16 %v734, %v732
    %v1207 = vpack.c.b16 %v737, %v735
    %v1208 = vpack.c.b16 %v738, %v736
    %v1209 = vpack.c.b16 %v741, %v739
    %v1210 = vpack.c.b16 %v742, %v740
    %v1211 = vpack.c.b16 %v745, %v743
    %v1212 = vpack.c.b16 %v746, %v744
    %v1213 = vpack.c.b16 %v749, %v747
    %v1214 = vpack.c.b16 %v750, %v748
    %v1215 = vpack.c.b16 %v753, %v751
    %v1216 = vpack.c.b16 %v754, %v752
    %v1217 = vpack.c.b16 %v757, %v755
    %v1218 = vpack.c.b16 %v758, %v756
    %v1219 = vpack.c.b16 %v761, %v759
    %v1220 = vpack.c.b16 %v762, %v760
    %v1221 = vpack.c.b16 %v765, %v763
    %v1222 = vpack.c.b16 %v766, %v764
    %v1223 = vpack.c.b16 %v769, %v767
    %v1224 = vpack.c.b16 %v770, %v768
    %v1225 = vpack.c.b16 %v773, %v771
    %v1226 = vpack.c.b16 %v774, %v772
    %v1227 = vpack.c.b16 %v777, %v775
    %v1228 = vpack.c.b16 %v778, %v776
    %v1229 = vpack.c.b16 %v781, %v779
    %v1230 = vpack.c.b16 %v782, %v780
    %v1231 = vpack.c.b16 %v785, %v783
    %v1232 = vpack.c.b16 %v786, %v784
    %v1233 = vpack.c.b16 %v789, %v787
    %v1234 = vpack.c.b16 %v790, %v788
    %v1235 = vpack.c.b16 %v793, %v791
    %v1236 = vpack.c.b16 %v794, %v792
    %v1237 = vpack.c.b16 %v797, %v795
    %v1238 = vpack.c.b16 %v798, %v796
    %v1239 = vpack.c.b16 %v801, %v799
    %v1240 = vpack.c.b16 %v802, %v800
    %v1241 = vpack.c.b16 %v805, %v803
    %v1242 = vpack.c.b16 %v806, %v804
    %v1243 = vpack.c.b16 %v809, %v807
    %v1244 = vpack.c.b16 %v810, %v808
    %v1245 = vpack.c.b16 %v813, %v811
    %v1246 = vpack.c.b16 %v814, %v812
    %v1247 = vpack.c.b16 %v817, %v815
    %v1248 = vpack.c.b16 %v818, %v816
    %v1249 = vpack.c.b16 %v821, %v819
    %v1250 = vpack.c.b16 %v822, %v820
    %v1251 = vpack.c.b16 %v825, %v823
    %v1252 = vpack.c.b16 %v826, %v824
    %v1253 = vpack.c.b16 %v829, %v827
    %v1254 = vpack.c.b16 %v830, %v828
    %v1255 = vpack.c.b16 %v833, %v831
    %v1256 = vpack.c.b16 %v834, %v832
    %v1257 = vpack.c.b16 %v837, %v835
    %v1258 = vpack.c.b16 %v838, %v836
    %v1259 = vpack.c.b16 %v841, %v839
    %v1260 = vpack.c.b16 %v842, %v840
    %v1261 = vpack.c.b16 %v845, %v843
    %v1262 = vpack.c.b16 %v846, %v844
    %v1263 = vpack.c.b16 %v849, %v847
    %v1264 = vpack.c.b16 %v850, %v848
    %v1265 = vpack.c.b16 %v853, %v851
    %v1266 = vpack.c.b16 %v854, %v852
    %v1267 = vpack.c.b16 %v857, %v855
    %v1268 = vpack.c.b16 %v858, %v856
    %v1269 = vpack.c.b16 %v861, %v859
    %v1270 = vpack.c.b16 %v862, %v860
    %v1271 = vpack.c.b16 %v865, %v863
    %v1272 = vpack.c.b16 %v866, %v864
    %v1273 = vpack.c.b16 %v869, %v867
    %v1274 = vpack.c.b16 %v870, %v868
    %v1275 = vpack.c.b16 %v873, %v871
    %v1276 = vpack.c.b16 %v874, %v872
    %v1277 = vpack.c.b16 %v877, %v875
    %v1278 = vpack.c.b16 %v878, %v876
    %v1279 = vpack.c.b16 %v881, %v879
    %v1280 = vpack.c.b16 %v882, %v880
    %v1281 = vpack.c.b16 %v885, %v883
    %v1282 = vpack.c.b16 %v886, %v884
    %v1283 = vpack.c.b16 %v889, %v887
    %v1284 = vpack.c.b16 %v890, %v888
    %v1285 = vpack.c.b16 %v893, %v891
    %v1286 = vpack.c.b16 %v894, %v892
    %v1287 = vpack.c.b16 %v897, %v895
    %v1288 = vpack.c.b16 %v898, %v896
    %v1289 = vpack.c.b16 %v901, %v899
    %v1290 = vpack.c.b16 %v902, %v900
    %v1291 = vpack.c.b16 %v905, %v903
    %v1292 = vpack.c.b16 %v906, %v904
    %v1293 = vpack.c.b16 %v909, %v907
    %v1294 = vpack.c.b16 %v910, %v908
    %v1295 = vpack.c.b16 %v913, %v911
    %v1296 = vpack.c.b16 %v914, %v912
    %v1297 = vpack.c.b16 %v917, %v915
    %v1298 = vpack.c.b16 %v918, %v916
    %v1299 = vpack.c.b16 %v921, %v919
    %v1300 = vpack.c.b16 %v922, %v920
    %v1301 = vpack.c.b16 %v925, %v923
    %v1302 = vpack.c.b16 %v926, %v924
    %v1303 = vpack.c.b16 %v929, %v927
    %v1304 = vpack.c.b16 %v930, %v928
    %v1305 = vpack.c.b16 %v933, %v931
    %v1306 = vpack.c.b16 %v934, %v932
    %v1307 = vpack.c.b16 %v937, %v935
    %v1308 = vpack.c.b16 %v938, %v936
    %v1309 = vpack.c.b16 %v941, %v939
    %v1310 = vpack.c.b16 %v942, %v940
    %v1311 = vpack.c.b16 %v945, %v943
    %v1312 = vpack.c.b16 %v946, %v944
    %v1313 = vpack.c.b16 %v949, %v947
    %v1314 = vpack.c.b16 %v950, %v948
    %v1315 = vpack.c.b16 %v953, %v951
    %v1316 = vpack.c.b16 %v954, %v952
    %v1317 = vpack.c.b16 %v957, %v955
    %v1318 = vpack.c.b16 %v958, %v956
    %v1319 = vpack.c.b16 %v961, %v959
    %v1320 = vpack.c.b16 %v962, %v960
    %v1321 = vpack.c.b16 %v965, %v963
    %v1322 = vpack.c.b16 %v966, %v964
    %v1323 = vpack.c.b16 %v969, %v967
    %v1324 = vpack.c.b16 %v970, %v968
    %v1325 = vpack.c.b16 %v973, %v971
    %v1326 = vpack.c.b16 %v974, %v972
    %v1327 = vpack.c.b16 %v977, %v975
    %v1328 = vpack.c.b16 %v978, %v976
    %v1329 = vpack.c.b16 %v981, %v979
    %v1330 = vpack.c.b16 %v982, %v980
    %v1331 = vpack.c.b16 %v985, %v983
    %v1332 = vpack.c.b16 %v986, %v984
    %v1333 = vpack.c.b16 %v989, %v987
    %v1334 = vpack.c.b16 %v990, %v988
    %v1335 = vpack.c.b16 %v993, %v991
    %v1336 = vpack.c.b16 %v994, %v992
    %v1337 = vpack.c.b16 %v997, %v995
    %v1338 = vpack.c.b16 %v998, %v996
    %v1339 = vpack.c.b16 %v1001, %v999
    %v1340 = vpack.c.b16 %v1002, %v1000
    %v1341 = vpack.c.b16 %v1005, %v1003
    %v1342 = vpack.c.b16 %v1006, %v1004
    %v1343 = vpack.c.b16 %v1009, %v1007
    %v1344 = vpack.c.b16 %v1010, %v1008
    %v1345 = vpack.c.b16 %v1013, %v1011
    %v1346 = vpack.c.b16 %v1014, %v1012
    %v1347 = vpack.c.b16 %v1017, %v1015
    %v1348 = vpack.c.b16 %v1018, %v1016
    %v1349 = vpack.c.b16 %v1021, %v1019
    %v1350 = vpack.c.b16 %v1022, %v1020
    %v1351 = vpack.c.b16 %v1025, %v1023
    %v1352 = vpack.c.b16 %v1026, %v1024
    %v1353 = vpack.c.b16 %v1029, %v1027
    %v1354 = vpack.c.b16 %v1030, %v1028
    %v1355 = vpack.c.b16 %v1033, %v1031
    %v1356 = vpack.c.b16 %v1034, %v1032
    %v1357 = vpack.c.b16 %v1037, %v1035
    %v1358 = vpack.c.b16 %v1038, %v1036
    %v1359 = vpack.c.b16 %v1041, %v1039
    %v1360 = vpack.c.b16 %v1042, %v1040
    %v1361 = vpack.c.b16 %v1045, %v1043
    %v1362 = vpack.c.b16 %v1046, %v1044
    %v1363 = vpack.c.b16 %v1049, %v1047
    %v1364 = vpack.c.b16 %v1050, %v1048
    %v1365 = vpack.c.b16 %v1053, %v1051
    %v1366 = vpack.c.b16 %v1054, %v1052
    %v1367 = vpack.c.b16 %v1057, %v1055
    %v1368 = vpack.c.b16 %v1058, %v1056
    %v1369 = vpack.c.b16 %v1061, %v1059
    %v1370 = vpack.c.b16 %v1062, %v1060
    %v1371 = vpack.c.b16 %v1065, %v1063
    %v1372 = vpack.c.b16 %v1066, %v1064
    %v1373 = vpack.c.b16 %v1069, %v1067
    %v1374 = vpack.c.b16 %v1070, %v1068
    %v1375 = vpack.c.b16 %v1073, %v1071
    %v1376 = vpack.c.b16 %v1074, %v1072
    %v1377 = vpack.c.b16 %v1077, %v1075
    %v1378 = vpack.c.b16 %v1078, %v1076
    %v1379 = vpack.c.b16 %v1081, %v1079
    %v1380 = vpack.c.b16 %v1082, %v1080
    %v1381 = vpack.c.b16 %v1085, %v1083
    %v1382 = vpack.c.b16 %v1086, %v1084
    %v1383 = vpack.c.b16 %v1089, %v1087
    %v1384 = vpack.c.b16 %v1090, %v1088
    %v1385 = vpack.c.b16 %v1093, %v1091
    %v1386 = vpack.c.b16 %v1094, %v1092
    %v1387 = vpack.c.b16 %v1097, %v1095
    %v1388 = vpack.c.b16 %v1098, %v1096
    %v1389 = vpack.c.b16 %v1101, %v1099
    %v1390 = vpack.c.b16 %v1102, %v1100
    %v1391 = vpack.c.b16 %v1105, %v1103
    %v1392 = vpack.c.b16 %v1106, %v1104
    %v1393 = vpack.c.b16 %v1109, %v1107
    %v1394 = vpack.c.b16 %v1110, %v1108
    %v1395 = vpack.c.b16 %v1113, %v1111
    %v1396 = vpack.c.b16 %v1114, %v1112
    %v1397 = vpack.c.b16 %v1117, %v1115
    %v1398 = vpack.c.b16 %v1118, %v1116
    %v1399 = vpack.c.b16 %v1121, %v1119
    %v1400 = vpack.c.b16 %v1122, %v1120
    %v1401 = vpack.c.b16 %v1125, %v1123
    %v1402 = vpack.c.b16 %v1126, %v1124
    %v1403 = vpack.c.b16 %v1129, %v1127
    %v1404 = vpack.c.b16 %v1130, %v1128
    %v1405 = vpack.c.b16 %v1133, %v1131
    %v1406 = vpack.c.b16 %v1134, %v1132
    %v1407 = vpack.c.b16 %v1137, %v1135
    %v1408 = vpack.c.b16 %v1138, %v1136
    %v1409 = vpack.c.b16 %v1141, %v1139
    %v1410 = vpack.c.b16 %v1142, %v1140
    %v1411 = vpack.c.b16 %v1145, %v1143
    %v1412 = vpack.c.b16 %v1146, %v1144
    %v1413 = vpack.c.b16 %v1149, %v1147
    %v1414 = vpack.c.b16 %v1150, %v1148
    %v1415 = vpack.c.b16 %v1153, %v1151
    %v1416 = vpack.c.b16 %v1154, %v1152
    %v1417 = vpack.c.b16 %v1157, %v1155
    %v1418 = vpack.c.b16 %v1158, %v1156
    %v1419 = vpack.c.b16 %v1161, %v1159
    %v1420 = vpack.c.b16 %v1162, %v1160
    %v1421 = vpack.c.b16 %v1165, %v1163
    %v1422 = vpack.c.b16 %v1166, %v1164
    %1679 = vmatprep.subr.bf16.mxu0 %v1168
    %1680 = vmatpush1.bf16.msra.mxu0 %v1167
    %1681 = vmatprep.subr.bf16.mxu0 %v1170
    %1682 = vmatpush1.bf16.msra.mxu0 %v1169
    %1683 = vmatprep.subr.bf16.mxu0 %v1172
    %1684 = vmatpush1.bf16.msra.mxu0 %v1171
    %1685 = vmatprep.subr.bf16.mxu0 %v1174
    %1686 = vmatpush1.bf16.msra.mxu0 %v1173
    %1687 = vmatprep.subr.bf16.mxu0 %v1176
    %1688 = vmatpush1.bf16.msra.mxu0 %v1175
    %1689 = vmatprep.subr.bf16.mxu0 %v1178
    %1690 = vmatpush1.bf16.msra.mxu0 %v1177
    %1691 = vmatprep.subr.bf16.mxu0 %v1180
    %1692 = vmatpush1.bf16.msra.mxu0 %v1179
    %1693 = vmatprep.subr.bf16.mxu0 %v1182
    %1694 = vmatpush1.bf16.msra.mxu0 %v1181
    %1695 = vmatprep.subr.bf16.mxu0 %v1184
    %1696 = vmatpush1.bf16.msra.mxu0 %v1183
    %1697 = vmatprep.subr.bf16.mxu0 %v1186
    %1698 = vmatpush1.bf16.msra.mxu0 %v1185
    %1699 = vmatprep.subr.bf16.mxu0 %v1188
    %1700 = vmatpush1.bf16.msra.mxu0 %v1187
    %1701 = vmatprep.subr.bf16.mxu0 %v1190
    %1702 = vmatpush1.bf16.msra.mxu0 %v1189
    %1703 = vmatprep.subr.bf16.mxu0 %v1192
    %1704 = vmatpush1.bf16.msra.mxu0 %v1191
    %1705 = vmatprep.subr.bf16.mxu0 %v1194
    %1706 = vmatpush1.bf16.msra.mxu0 %v1193
    %1707 = vmatprep.subr.bf16.mxu0 %v1196
    %1708 = vmatpush1.bf16.msra.mxu0 %v1195
    %1709 = vmatprep.subr.bf16.mxu0 %v1198
    %1710 = vmatpush1.bf16.msra.mxu0 %v1197
    %1711 = vmatprep.mubr.bf16.mxu0 %v368
    %1712 = vmatmul.mubr.bf16.gmra.mrb[0].mxu0 %v367
    %v1713 = vpop.f32.mrb[0].mxu0
    %v1714 = vadd.f32 0.0, %v1713
    %v1715 = vpop.f32.mrb[0].mxu0
    %v1716 = vadd.f32 0.0, %v1715
    %v1717 = vpop.f32.mrb[0].mxu0
    %v1718 = vadd.f32 0.0, %v1717
    %v1719 = vpop.f32.mrb[0].mxu0
    %v1720 = vadd.f32 0.0, %v1719
    %1721 = vdwg.mxu0
    %1722 = vmatprep.subr.bf16.mxu0 %v1200
    %1723 = vmatpush1.bf16.msra.mxu0 %v1199
    %1724 = vmatprep.subr.bf16.mxu0 %v1202
    %1725 = vmatpush1.bf16.msra.mxu0 %v1201
    %1726 = vmatprep.subr.bf16.mxu0 %v1204
    %1727 = vmatpush1.bf16.msra.mxu0 %v1203
    %1728 = vmatprep.subr.bf16.mxu0 %v1206
    %1729 = vmatpush1.bf16.msra.mxu0 %v1205
    %1730 = vmatprep.subr.bf16.mxu0 %v1208
    %1731 = vmatpush1.bf16.msra.mxu0 %v1207
    %1732 = vmatprep.subr.bf16.mxu0 %v1210
    %1733 = vmatpush1.bf16.msra.mxu0 %v1209
    %1734 = vmatprep.subr.bf16.mxu0 %v1212
    %1735 = vmatpush1.bf16.msra.mxu0 %v1211
    %1736 = vmatprep.subr.bf16.mxu0 %v1214
    %1737 = vmatpush1.bf16.msra.mxu0 %v1213
    %1738 = vmatprep.subr.bf16.mxu0 %v1216
    %1739 = vmatpush1.bf16.msra.mxu0 %v1215
    %1740 = vmatprep.subr.bf16.mxu0 %v1218
    %1741 = vmatpush1.bf16.msra.mxu0 %v1217
    %1742 = vmatprep.subr.bf16.mxu0 %v1220
    %1743 = vmatpush1.bf16.msra.mxu0 %v1219
    %1744 = vmatprep.subr.bf16.mxu0 %v1222
    %1745 = vmatpush1.bf16.msra.mxu0 %v1221
    %1746 = vmatprep.subr.bf16.mxu0 %v1224
    %1747 = vmatpush1.bf16.msra.mxu0 %v1223
    %1748 = vmatprep.subr.bf16.mxu0 %v1226
    %1749 = vmatpush1.bf16.msra.mxu0 %v1225
    %1750 = vmatprep.subr.bf16.mxu0 %v1228
    %1751 = vmatpush1.bf16.msra.mxu0 %v1227
    %1752 = vmatprep.subr.bf16.mxu0 %v1230
    %1753 = vmatpush1.bf16.msra.mxu0 %v1229
    %1754 = vmatprep.mubr.bf16.mxu0 %v370
    %1755 = vmatmul.mubr.bf16.gmra.mrb[0].mxu0 %v369
    %v1756 = vpop.f32.mrb[0].mxu0
    %v1757 = vadd.f32 %v1714, %v1756
    %v1758 = vpop.f32.mrb[0].mxu0
    %v1759 = vadd.f32 %v1716, %v1758
    %v1760 = vpop.f32.mrb[0].mxu0
    %v1761 = vadd.f32 %v1718, %v1760
    %v1762 = vpop.f32.mrb[0].mxu0
    %v1763 = vadd.f32 %v1720, %v1762
    %1764 = vdwg.mxu0
    %1765 = vmatprep.subr.bf16.mxu0 %v1232
    %1766 = vmatpush1.bf16.msra.mxu0 %v1231
    %1767 = vmatprep.subr.bf16.mxu0 %v1234
    %1768 = vmatpush1.bf16.msra.mxu0 %v1233
    %1769 = vmatprep.subr.bf16.mxu0 %v1236
    %1770 = vmatpush1.bf16.msra.mxu0 %v1235
    %1771 = vmatprep.subr.bf16.mxu0 %v1238
    %1772 = vmatpush1.bf16.msra.mxu0 %v1237
    %1773 = vmatprep.subr.bf16.mxu0 %v1240
    %1774 = vmatpush1.bf16.msra.mxu0 %v1239
    %1775 = vmatprep.subr.bf16.mxu0 %v1242
    %1776 = vmatpush1.bf16.msra.mxu0 %v1241
    %1777 = vmatprep.subr.bf16.mxu0 %v1244
    %1778 = vmatpush1.bf16.msra.mxu0 %v1243
    %1779 = vmatprep.subr.bf16.mxu0 %v1246
    %1780 = vmatpush1.bf16.msra.mxu0 %v1245
    %1781 = vmatprep.subr.bf16.mxu0 %v1248
    %1782 = vmatpush1.bf16.msra.mxu0 %v1247
    %1783 = vmatprep.subr.bf16.mxu0 %v1250
    %1784 = vmatpush1.bf16.msra.mxu0 %v1249
    %1785 = vmatprep.subr.bf16.mxu0 %v1252
    %1786 = vmatpush1.bf16.msra.mxu0 %v1251
    %1787 = vmatprep.subr.bf16.mxu0 %v1254
    %1788 = vmatpush1.bf16.msra.mxu0 %v1253
    %1789 = vmatprep.subr.bf16.mxu0 %v1256
    %1790 = vmatpush1.bf16.msra.mxu0 %v1255
    %1791 = vmatprep.subr.bf16.mxu0 %v1258
    %1792 = vmatpush1.bf16.msra.mxu0 %v1257
    %1793 = vmatprep.subr.bf16.mxu0 %v1260
    %1794 = vmatpush1.bf16.msra.mxu0 %v1259
    %1795 = vmatprep.subr.bf16.mxu0 %v1262
    %1796 = vmatpush1.bf16.msra.mxu0 %v1261
    %1797 = vmatprep.mubr.bf16.mxu0 %v372
    %1798 = vmatmul.mubr.bf16.gmra.mrb[0].mxu0 %v371
    %v1799 = vpop.f32.mrb[0].mxu0
    %v1800 = vadd.f32 %v1757, %v1799
    %v1801 = vpop.f32.mrb[0].mxu0
    %v1802 = vadd.f32 %v1759, %v1801
    %v1803 = vpop.f32.mrb[0].mxu0
    %v1804 = vadd.f32 %v1761, %v1803
    %v1805 = vpop.f32.mrb[0].mxu0
    %v1806 = vadd.f32 %v1763, %v1805
    %1807 = vdwg.mxu0
    %1808 = vmatprep.subr.bf16.mxu0 %v1264
    %1809 = vmatpush1.bf16.msra.mxu0 %v1263
    %1810 = vmatprep.subr.bf16.mxu0 %v1266
    %1811 = vmatpush1.bf16.msra.mxu0 %v1265
    %1812 = vmatprep.subr.bf16.mxu0 %v1268
    %1813 = vmatpush1.bf16.msra.mxu0 %v1267
    %1814 = vmatprep.subr.bf16.mxu0 %v1270
    %1815 = vmatpush1.bf16.msra.mxu0 %v1269
    %1816 = vmatprep.subr.bf16.mxu0 %v1272
    %1817 = vmatpush1.bf16.msra.mxu0 %v1271
    %1818 = vmatprep.subr.bf16.mxu0 %v1274
    %1819 = vmatpush1.bf16.msra.mxu0 %v1273
    %1820 = vmatprep.subr.bf16.mxu0 %v1276
    %1821 = vmatpush1.bf16.msra.mxu0 %v1275
    %1822 = vmatprep.subr.bf16.mxu0 %v1278
    %1823 = vmatpush1.bf16.msra.mxu0 %v1277
    %1824 = vmatprep.subr.bf16.mxu0 %v1280
    %1825 = vmatpush1.bf16.msra.mxu0 %v1279
    %1826 = vmatprep.subr.bf16.mxu0 %v1282
    %1827 = vmatpush1.bf16.msra.mxu0 %v1281
    %1828 = vmatprep.subr.bf16.mxu0 %v1284
    %1829 = vmatpush1.bf16.msra.mxu0 %v1283
    %1830 = vmatprep.subr.bf16.mxu0 %v1286
    %1831 = vmatpush1.bf16.msra.mxu0 %v1285
    %1832 = vmatprep.subr.bf16.mxu0 %v1288
    %1833 = vmatpush1.bf16.msra.mxu0 %v1287
    %1834 = vmatprep.subr.bf16.mxu0 %v1290
    %1835 = vmatpush1.bf16.msra.mxu0 %v1289
    %1836 = vmatprep.subr.bf16.mxu0 %v1292
    %1837 = vmatpush1.bf16.msra.mxu0 %v1291
    %1838 = vmatprep.subr.bf16.mxu0 %v1294
    %1839 = vmatpush1.bf16.msra.mxu0 %v1293
    %1840 = vmatprep.mubr.bf16.mxu0 %v374
    %1841 = vmatmul.mubr.bf16.gmra.mrb[0].mxu0 %v373
    %v1842 = vpop.f32.mrb[0].mxu0
    %v1843 = vadd.f32 %v1800, %v1842
    %v1844 = vpop.f32.mrb[0].mxu0
    %v1845 = vadd.f32 %v1802, %v1844
    %v1846 = vpop.f32.mrb[0].mxu0
    %v1847 = vadd.f32 %v1804, %v1846
    %v1848 = vpop.f32.mrb[0].mxu0
    %v1849 = vadd.f32 %v1806, %v1848
    %1850 = vdwg.mxu0
    %1851 = vmatprep.subr.bf16.mxu0 %v1296
    %1852 = vmatpush1.bf16.msra.mxu0 %v1295
    %1853 = vmatprep.subr.bf16.mxu0 %v1298
    %1854 = vmatpush1.bf16.msra.mxu0 %v1297
    %1855 = vmatprep.subr.bf16.mxu0 %v1300
    %1856 = vmatpush1.bf16.msra.mxu0 %v1299
    %1857 = vmatprep.subr.bf16.mxu0 %v1302
    %1858 = vmatpush1.bf16.msra.mxu0 %v1301
    %1859 = vmatprep.subr.bf16.mxu0 %v1304
    %1860 = vmatpush1.bf16.msra.mxu0 %v1303
    %1861 = vmatprep.subr.bf16.mxu0 %v1306
    %1862 = vmatpush1.bf16.msra.mxu0 %v1305
    %1863 = vmatprep.subr.bf16.mxu0 %v1308
    %1864 = vmatpush1.bf16.msra.mxu0 %v1307
    %1865 = vmatprep.subr.bf16.mxu0 %v1310
    %1866 = vmatpush1.bf16.msra.mxu0 %v1309
    %1867 = vmatprep.subr.bf16.mxu0 %v1312
    %1868 = vmatpush1.bf16.msra.mxu0 %v1311
    %1869 = vmatprep.subr.bf16.mxu0 %v1314
    %1870 = vmatpush1.bf16.msra.mxu0 %v1313
    %1871 = vmatprep.subr.bf16.mxu0 %v1316
    %1872 = vmatpush1.bf16.msra.mxu0 %v1315
    %1873 = vmatprep.subr.bf16.mxu0 %v1318
    %1874 = vmatpush1.bf16.msra.mxu0 %v1317
    %1875 = vmatprep.subr.bf16.mxu0 %v1320
    %1876 = vmatpush1.bf16.msra.mxu0 %v1319
    %1877 = vmatprep.subr.bf16.mxu0 %v1322
    %1878 = vmatpush1.bf16.msra.mxu0 %v1321
    %1879 = vmatprep.subr.bf16.mxu0 %v1324
    %1880 = vmatpush1.bf16.msra.mxu0 %v1323
    %1881 = vmatprep.subr.bf16.mxu0 %v1326
    %1882 = vmatpush1.bf16.msra.mxu0 %v1325
    %1883 = vmatprep.mubr.bf16.mxu0 %v376
    %1884 = vmatmul.mubr.bf16.gmra.mrb[0].mxu0 %v375
    %v1885 = vpop.f32.mrb[0].mxu0
    %v1886 = vadd.f32 %v1843, %v1885
    %v1887 = vpop.f32.mrb[0].mxu0
    %v1888 = vadd.f32 %v1845, %v1887
    %v1889 = vpop.f32.mrb[0].mxu0
    %v1890 = vadd.f32 %v1847, %v1889
    %v1891 = vpop.f32.mrb[0].mxu0
    %v1892 = vadd.f32 %v1849, %v1891
    %1893 = vdwg.mxu0
    %1894 = vmatprep.subr.bf16.mxu0 %v1328
    %1895 = vmatpush1.bf16.msra.mxu0 %v1327
    %1896 = vmatprep.subr.bf16.mxu0 %v1330
    %1897 = vmatpush1.bf16.msra.mxu0 %v1329
    %1898 = vmatprep.subr.bf16.mxu0 %v1332
    %1899 = vmatpush1.bf16.msra.mxu0 %v1331
    %1900 = vmatprep.subr.bf16.mxu0 %v1334
    %1901 = vmatpush1.bf16.msra.mxu0 %v1333
    %1902 = vmatprep.subr.bf16.mxu0 %v1336
    %1903 = vmatpush1.bf16.msra.mxu0 %v1335
    %1904 = vmatprep.subr.bf16.mxu0 %v1338
    %1905 = vmatpush1.bf16.msra.mxu0 %v1337
    %1906 = vmatprep.subr.bf16.mxu0 %v1340
    %1907 = vmatpush1.bf16.msra.mxu0 %v1339
    %1908 = vmatprep.subr.bf16.mxu0 %v1342
    %1909 = vmatpush1.bf16.msra.mxu0 %v1341
    %1910 = vmatprep.subr.bf16.mxu0 %v1344
    %1911 = vmatpush1.bf16.msra.mxu0 %v1343
    %1912 = vmatprep.subr.bf16.mxu0 %v1346
    %1913 = vmatpush1.bf16.msra.mxu0 %v1345
    %1914 = vmatprep.subr.bf16.mxu0 %v1348
    %1915 = vmatpush1.bf16.msra.mxu0 %v1347
    %1916 = vmatprep.subr.bf16.mxu0 %v1350
    %1917 = vmatpush1.bf16.msra.mxu0 %v1349
    %1918 = vmatprep.subr.bf16.mxu0 %v1352
    %1919 = vmatpush1.bf16.msra.mxu0 %v1351
    %1920 = vmatprep.subr.bf16.mxu0 %v1354
    %1921 = vmatpush1.bf16.msra.mxu0 %v1353
    %1922 = vmatprep.subr.bf16.mxu0 %v1356
    %1923 = vmatpush1.bf16.msra.mxu0 %v1355
    %1924 = vmatprep.subr.bf16.mxu0 %v1358
    %1925 = vmatpush1.bf16.msra.mxu0 %v1357
    %1926 = vmatprep.mubr.bf16.mxu0 %v378
    %1927 = vmatmul.mubr.bf16.gmra.mrb[0].mxu0 %v377
    %v1928 = vpop.f32.mrb[0].mxu0
    %v1929 = vadd.f32 %v1886, %v1928
    %v1930 = vpop.f32.mrb[0].mxu0
    %v1931 = vadd.f32 %v1888, %v1930
    %v1932 = vpop.f32.mrb[0].mxu0
    %v1933 = vadd.f32 %v1890, %v1932
    %v1934 = vpop.f32.mrb[0].mxu0
    %v1935 = vadd.f32 %v1892, %v1934
    %1936 = vdwg.mxu0
    %1937 = vmatprep.subr.bf16.mxu0 %v1360
    %1938 = vmatpush1.bf16.msra.mxu0 %v1359
    %1939 = vmatprep.subr.bf16.mxu0 %v1362
    %1940 = vmatpush1.bf16.msra.mxu0 %v1361
    %1941 = vmatprep.subr.bf16.mxu0 %v1364
    %1942 = vmatpush1.bf16.msra.mxu0 %v1363
    %1943 = vmatprep.subr.bf16.mxu0 %v1366
    %1944 = vmatpush1.bf16.msra.mxu0 %v1365
    %1945 = vmatprep.subr.bf16.mxu0 %v1368
    %1946 = vmatpush1.bf16.msra.mxu0 %v1367
    %1947 = vmatprep.subr.bf16.mxu0 %v1370
    %1948 = vmatpush1.bf16.msra.mxu0 %v1369
    %1949 = vmatprep.subr.bf16.mxu0 %v1372
    %1950 = vmatpush1.bf16.msra.mxu0 %v1371
    %1951 = vmatprep.subr.bf16.mxu0 %v1374
    %1952 = vmatpush1.bf16.msra.mxu0 %v1373
    %1953 = vmatprep.subr.bf16.mxu0 %v1376
    %1954 = vmatpush1.bf16.msra.mxu0 %v1375
    %1955 = vmatprep.subr.bf16.mxu0 %v1378
    %1956 = vmatpush1.bf16.msra.mxu0 %v1377
    %1957 = vmatprep.subr.bf16.mxu0 %v1380
    %1958 = vmatpush1.bf16.msra.mxu0 %v1379
    %1959 = vmatprep.subr.bf16.mxu0 %v1382
    %1960 = vmatpush1.bf16.msra.mxu0 %v1381
    %1961 = vmatprep.subr.bf16.mxu0 %v1384
    %1962 = vmatpush1.bf16.msra.mxu0 %v1383
    %1963 = vmatprep.subr.bf16.mxu0 %v1386
    %1964 = vmatpush1.bf16.msra.mxu0 %v1385
    %1965 = vmatprep.subr.bf16.mxu0 %v1388
    %1966 = vmatpush1.bf16.msra.mxu0 %v1387
    %1967 = vmatprep.subr.bf16.mxu0 %v1390
    %1968 = vmatpush1.bf16.msra.mxu0 %v1389
    %1969 = vmatprep.mubr.bf16.mxu0 %v380
    %1970 = vmatmul.mubr.bf16.gmra.mrb[0].mxu0 %v379
    %v1971 = vpop.f32.mrb[0].mxu0
    %v1972 = vadd.f32 %v1929, %v1971
    %v1973 = vpop.f32.mrb[0].mxu0
    %v1974 = vadd.f32 %v1931, %v1973
    %v1975 = vpop.f32.mrb[0].mxu0
    %v1976 = vadd.f32 %v1933, %v1975
    %v1977 = vpop.f32.mrb[0].mxu0
    %v1978 = vadd.f32 %v1935, %v1977
    %1979 = vdwg.mxu0
    %1980 = vmatprep.subr.bf16.mxu0 %v1392
    %1981 = vmatpush1.bf16.msra.mxu0 %v1391
    %1982 = vmatprep.subr.bf16.mxu0 %v1394
    %1983 = vmatpush1.bf16.msra.mxu0 %v1393
    %1984 = vmatprep.subr.bf16.mxu0 %v1396
    %1985 = vmatpush1.bf16.msra.mxu0 %v1395
    %1986 = vmatprep.subr.bf16.mxu0 %v1398
    %1987 = vmatpush1.bf16.msra.mxu0 %v1397
    %1988 = vmatprep.subr.bf16.mxu0 %v1400
    %1989 = vmatpush1.bf16.msra.mxu0 %v1399
    %1990 = vmatprep.subr.bf16.mxu0 %v1402
    %1991 = vmatpush1.bf16.msra.mxu0 %v1401
    %1992 = vmatprep.subr.bf16.mxu0 %v1404
    %1993 = vmatpush1.bf16.msra.mxu0 %v1403
    %1994 = vmatprep.subr.bf16.mxu0 %v1406
    %1995 = vmatpush1.bf16.msra.mxu0 %v1405
    %1996 = vmatprep.subr.bf16.mxu0 %v1408
    %1997 = vmatpush1.bf16.msra.mxu0 %v1407
    %1998 = vmatprep.subr.bf16.mxu0 %v1410
    %1999 = vmatpush1.bf16.msra.mxu0 %v1409
    %2000 = vmatprep.subr.bf16.mxu0 %v1412
    %2001 = vmatpush1.bf16.msra.mxu0 %v1411
    %2002 = vmatprep.subr.bf16.mxu0 %v1414
    %2003 = vmatpush1.bf16.msra.mxu0 %v1413
    %2004 = vmatprep.subr.bf16.mxu0 %v1416
    %2005 = vmatpush1.bf16.msra.mxu0 %v1415
    %2006 = vmatprep.subr.bf16.mxu0 %v1418
    %2007 = vmatpush1.bf16.msra.mxu0 %v1417
    %2008 = vmatprep.subr.bf16.mxu0 %v1420
    %2009 = vmatpush1.bf16.msra.mxu0 %v1419
    %2010 = vmatprep.subr.bf16.mxu0 %v1422
    %2011 = vmatpush1.bf16.msra.mxu0 %v1421
    %2012 = vmatprep.mubr.bf16.mxu0 %v382
    %2013 = vmatmul.mubr.bf16.gmra.mrb[0].mxu0 %v381
    %v2014 = vpop.f32.mrb[0].mxu0
    %v2015 = vadd.f32 %v1972, %v2014
    %v2016 = vpop.f32.mrb[0].mxu0
    %v2017 = vadd.f32 %v1974, %v2016
    %v2018 = vpop.f32.mrb[0].mxu0
    %v2019 = vadd.f32 %v1976, %v2018
    %v2020 = vpop.f32.mrb[0].mxu0
    %v2021 = vadd.f32 %v1978, %v2020
    %2022 = vdwg.mxu0
    %v2023 = vadd.f32 %v43, %v2015
    %v2024 = vadd.f32 %v44, %v2017
    %v2025 = vadd.f32 %v45, %v2019
    %v2026 = vadd.f32 %v46, %v2021
    %2027 = vst [vmem:[#allocation2] sm:$0xff] %v2023
    %2028 = vst [vmem:[#allocation2 + $0x8] sm:$0xff] %v2024
    %2029 = vst [vmem:[#allocation2 + $0x10] sm:$0xff] %v2025
    %2030 = vst [vmem:[#allocation2 + $0x18] sm:$0xff] %v2026
    // Predicated region
    $region30: #{simple_video_classifier_forward.1} parent=1 // pred_check
      %p2031 = pneg %p35
    $region31: #{simple_video_classifier_forward.1} parent=1 // pred_check_branch
      %2033 = sbr.rel (%p2031) target = $region33
    $region32: #{simple_video_classifier_forward.1} parent=1 // pred_region
      %v2034 = vld [vmem:[#allocation2] sm:$0xff]
      %v2035 = vld [vmem:[#allocation2 + $0x8] sm:$0xff]
      %v2036 = vld [vmem:[#allocation2 + $0x10] sm:$0xff]
      %v2037 = vld [vmem:[#allocation2 + $0x18] sm:$0xff]
      %v2038 = vld [vmem:[%s2] sm:$0x3]
      %v2040 = vlaneseq
      %v2041 = vshrl.u32 %v2040, 7
      %v2042 = vsub.s32 0, %v2041
      %v2043 = vrot.slane %v2038, %v2042
      %v2044 = vlaneseq
      %v2045 = vshrl.u32 %v2044, 7
      %v2046 = vsub.s32 1, %v2045
      %v2047 = vrot.slane %v2038, %v2046
      %v2050 = vadd.f32 %v2034, %v2043
      %v2051 = vadd.f32 %v2035, %v2047
      %v2052 = vadd.f32 %v2036, %v2043
      %v2053 = vadd.f32 %v2037, %v2047
      %v2054 = vmax.f32 %v2050, 0.0
      %v2055 = vmax.f32 %v2051, 0.0
      %v2056 = vmax.f32 %v2052, 0.0
      %v2057 = vmax.f32 %v2053, 0.0
      %v2058 = vpack.c.bf16 %v2056, %v2054
      %v2059 = vpack.c.bf16 %v2057, %v2055
      %v2060 = vld [vmem:[%s3] sm:$0xf]
      %v2061 = vld [vmem:[%s3 + $0x4] sm:$0xf]
      %v2062 = vld [vmem:[%s3 + $0x8] sm:$0xf]
      %v2063 = vld [vmem:[%s3 + $0xc] sm:$0xf]
      %v2064 = vld [vmem:[%s3 + $0x10] sm:$0xf]
      %v2065 = vld [vmem:[%s3 + $0x14] sm:$0xf]
      %v2066 = vld [vmem:[%s3 + $0x18] sm:$0xf]
      %v2067 = vld [vmem:[%s3 + $0x1c] sm:$0xf]
      %v2068 = vld [vmem:[%s3 + $0x20] sm:$0xf]
      %v2069 = vld [vmem:[%s3 + $0x24] sm:$0xf]
      %v2070 = vld [vmem:[%s3 + $0x28] sm:$0xf]
      %v2071 = vld [vmem:[%s3 + $0x2c] sm:$0xf]
      %v2072 = vld [vmem:[%s3 + $0x30] sm:$0xf]
      %v2073 = vld [vmem:[%s3 + $0x34] sm:$0xf]
      %v2074 = vld [vmem:[%s3 + $0x38] sm:$0xf]
      %v2075 = vld [vmem:[%s3 + $0x3c] sm:$0xf]
      %v2076 = vld [vmem:[%s3 + $0x40] sm:$0xf]
      %v2077 = vld [vmem:[%s3 + $0x44] sm:$0xf]
      %v2078 = vld [vmem:[%s3 + $0x48] sm:$0xf]
      %v2079 = vld [vmem:[%s3 + $0x4c] sm:$0xf]
      %v2080 = vld [vmem:[%s3 + $0x50] sm:$0xf]
      %v2081 = vld [vmem:[%s3 + $0x54] sm:$0xf]
      %v2082 = vld [vmem:[%s3 + $0x58] sm:$0xf]
      %v2083 = vld [vmem:[%s3 + $0x5c] sm:$0xf]
      %v2084 = vld [vmem:[%s3 + $0x60] sm:$0xf]
      %v2085 = vld [vmem:[%s3 + $0x64] sm:$0xf]
      %v2086 = vld [vmem:[%s3 + $0x68] sm:$0xf]
      %v2087 = vld [vmem:[%s3 + $0x6c] sm:$0xf]
      %v2088 = vld [vmem:[%s3 + $0x70] sm:$0xf]
      %v2089 = vld [vmem:[%s3 + $0x74] sm:$0xf]
      %v2090 = vld [vmem:[%s3 + $0x78] sm:$0xf]
      %v2091 = vld [vmem:[%s3 + $0x7c] sm:$0xf]
      %v2092 = vld [vmem:[%s4] sm:$0x1]
      %v2094 = vlaneseq
      %v2095 = vshrl.u32 %v2094, 7
      %v2096 = vsub.s32 0, %v2095
      %v2097 = vrot.slane %v2092, %v2096
      %v2131 = vunpack.c.l.b16 %v2060
      %v2132 = vunpack.c.l.b16 %v2061
      %v2133 = vunpack.c.l.b16 %v2062
      %v2134 = vunpack.c.l.b16 %v2063
      %v2135 = vunpack.c.l.b16 %v2064
      %v2136 = vunpack.c.l.b16 %v2065
      %v2137 = vunpack.c.l.b16 %v2066
      %v2138 = vunpack.c.l.b16 %v2067
      %v2139 = vunpack.c.l.b16 %v2068
      %v2140 = vunpack.c.l.b16 %v2069
      %v2141 = vunpack.c.l.b16 %v2070
      %v2142 = vunpack.c.l.b16 %v2071
      %v2143 = vunpack.c.l.b16 %v2072
      %v2144 = vunpack.c.l.b16 %v2073
      %v2145 = vunpack.c.l.b16 %v2074
      %v2146 = vunpack.c.l.b16 %v2075
      %v2147 = vunpack.c.l.b16 %v2076
      %v2148 = vunpack.c.l.b16 %v2077
      %v2149 = vunpack.c.l.b16 %v2078
      %v2150 = vunpack.c.l.b16 %v2079
      %v2151 = vunpack.c.l.b16 %v2080
      %v2152 = vunpack.c.l.b16 %v2081
      %v2153 = vunpack.c.l.b16 %v2082
      %v2154 = vunpack.c.l.b16 %v2083
      %v2155 = vunpack.c.l.b16 %v2084
      %v2156 = vunpack.c.l.b16 %v2085
      %v2157 = vunpack.c.l.b16 %v2086
      %v2158 = vunpack.c.l.b16 %v2087
      %v2159 = vunpack.c.l.b16 %v2088
      %v2160 = vunpack.c.l.b16 %v2089
      %v2161 = vunpack.c.l.b16 %v2090
      %v2162 = vunpack.c.l.b16 %v2091
      %v2163 = vpack.c.b16 %v2132, %v2131
      %v2164 = vpack.c.b16 %v2134, %v2133
      %v2165 = vpack.c.b16 %v2136, %v2135
      %v2166 = vpack.c.b16 %v2138, %v2137
      %v2167 = vpack.c.b16 %v2140, %v2139
      %v2168 = vpack.c.b16 %v2142, %v2141
      %v2169 = vpack.c.b16 %v2144, %v2143
      %v2170 = vpack.c.b16 %v2146, %v2145
      %v2171 = vpack.c.b16 %v2148, %v2147
      %v2172 = vpack.c.b16 %v2150, %v2149
      %v2173 = vpack.c.b16 %v2152, %v2151
      %v2174 = vpack.c.b16 %v2154, %v2153
      %v2175 = vpack.c.b16 %v2156, %v2155
      %v2176 = vpack.c.b16 %v2158, %v2157
      %v2177 = vpack.c.b16 %v2160, %v2159
      %v2178 = vpack.c.b16 %v2162, %v2161
      %2195 = vmatprep.subr.bf16.mxu0 0
      %2196 = vmatpush1.bf16.msra.mxu0 %v2163
      %2197 = vmatprep.subr.bf16.mxu0 0
      %2198 = vmatpush1.bf16.msra.mxu0 %v2164
      %2199 = vmatprep.subr.bf16.mxu0 0
      %2200 = vmatpush1.bf16.msra.mxu0 %v2165
      %2201 = vmatprep.subr.bf16.mxu0 0
      %2202 = vmatpush1.bf16.msra.mxu0 %v2166
      %2203 = vmatprep.subr.bf16.mxu0 0
      %2204 = vmatpush1.bf16.msra.mxu0 %v2167
      %2205 = vmatprep.subr.bf16.mxu0 0
      %2206 = vmatpush1.bf16.msra.mxu0 %v2168
      %2207 = vmatprep.subr.bf16.mxu0 0
      %2208 = vmatpush1.bf16.msra.mxu0 %v2169
      %2209 = vmatprep.subr.bf16.mxu0 0
      %2210 = vmatpush1.bf16.msra.mxu0 %v2170
      %2211 = vmatprep.subr.bf16.mxu0 0
      %2212 = vmatpush1.bf16.msra.mxu0 %v2171
      %2213 = vmatprep.subr.bf16.mxu0 0
      %2214 = vmatpush1.bf16.msra.mxu0 %v2172
      %2215 = vmatprep.subr.bf16.mxu0 0
      %2216 = vmatpush1.bf16.msra.mxu0 %v2173
      %2217 = vmatprep.subr.bf16.mxu0 0
      %2218 = vmatpush1.bf16.msra.mxu0 %v2174
      %2219 = vmatprep.subr.bf16.mxu0 0
      %2220 = vmatpush1.bf16.msra.mxu0 %v2175
      %2221 = vmatprep.subr.bf16.mxu0 0
      %2222 = vmatpush1.bf16.msra.mxu0 %v2176
      %2223 = vmatprep.subr.bf16.mxu0 0
      %2224 = vmatpush1.bf16.msra.mxu0 %v2177
      %2225 = vmatprep.subr.bf16.mxu0 0
      %2226 = vmatpush1.bf16.msra.mxu0 %v2178
      %2227 = vmatprep.mubr.bf16.mxu0 %v2059
      %2228 = vmatmul.mubr.bf16.gmra.mrb[0].mxu0 %v2058
      %v2229 = vpop.f32.mrb[0].mxu0
      %v2230 = vadd.f32 %v2097, %v2229
      %v2231 = vpop.f32.mrb[0].mxu0
      %v2232 = vpop.f32.mrb[0].mxu0
      %v2233 = vadd.f32 %v2097, %v2232
      %v2234 = vpop.f32.mrb[0].mxu0
      %2235 = vdwg.mxu0
      %2236 = vst [vmem:[%s5] sm:$0xff] %v2230
      %2237 = vst [vmem:[%s5 + $0x8] sm:$0xff] %v2233
    $region33: #{simple_video_classifier_forward.1} parent=1 // pred_fallthru
      _
    // Predicated region
    $region34: #{simple_video_classifier_forward.1} parent=1 // pred_check
      _
    $region35: #{simple_video_classifier_forward.1} parent=1 // pred_check_branch
      %2239 = sbr.rel (0) target = $region37
    $region36: #{simple_video_classifier_forward.1} parent=1 // pred_region
      _
    $region37: #{simple_video_classifier_forward.1} parent=1 // pred_fallthru
      _
    // Predicated region
    $region38: #{simple_video_classifier_forward.1} parent=1 // pred_check
      _
    $region39: #{simple_video_classifier_forward.1} parent=1 // pred_check_branch
      %2241 = sbr.rel (0) target = $region41
    $region40: #{simple_video_classifier_forward.1} parent=1 // pred_region
      _
    $region41: #{simple_video_classifier_forward.1} parent=1 // pred_fallthru
      _
    %2242 = vsyncpa [#allocation4], 1

</llo_original>
